<compile_context>
chip_gen: v7x
topology: tpu7x:2x2x1
jax: 0.10.0
libtpu: 0.0.40
codegen_flags: <defaults>
</compile_context>

<pallas_src>
import functools

import jax
import jax.numpy as jnp
from jax.experimental import pallas as pl
from jax.experimental.pallas import tpu as pltpu


# ----------------------------------------------------------------------------- kernel


def _fused_loss_kernel(
    tgt_ref,                 # (B, 1) int32 class targets
    s_cls_ref, t_cls_ref,    # (B, C)
    s_reg_ref, t_reg_ref, y_reg_ref,   # (B, R)
    sf1_ref, tf1_ref, w1_ref, b1_ref,  # feature 1: (B,Cin,HW),(B,Cout,HW),(Cout,Cin),(Cout,1)
    sf2_ref, tf2_ref, w2_ref, b2_ref,
    sf3_ref, tf3_ref, w3_ref, b3_ref,
    sf4_ref, tf4_ref, w4_ref, b4_ref,
    sf5_ref, tf5_ref,                  # feature 5: identity adapter, no params
    out_ref,                 # (1, 6) SMEM: total, cls, reg, soft_cls, soft_reg, feature
    *, alpha, temp, feature_weights):

    f32 = jnp.float32

    # ---------------- classification: CrossEntropy + T^2 * KL(batchmean) ----------------
    s = s_cls_ref[...].astype(f32)          # (B, C)
    t = t_cls_ref[...].astype(f32)
    B, C = s.shape

    s_sh = s - jnp.max(s, axis=1, keepdims=True)
    log_sm = s_sh - jnp.log(jnp.sum(jnp.exp(s_sh), axis=1, keepdims=True))

    col = jax.lax.broadcasted_iota(jnp.int32, (B, C), 1)
    tgt = tgt_ref[...]                      # (B, 1) int32
    picked = jnp.where(col == tgt, log_sm, 0.0)
    cls_loss = -jnp.sum(picked) / B

    # temperature branch reuses the shifted logits: max(s/T) = max(s)/T
    st_sh = s_sh / temp
    s_logp = st_sh - jnp.log(jnp.sum(jnp.exp(st_sh), axis=1, keepdims=True))
    tt_sh = (t - jnp.max(t, axis=1, keepdims=True)) / temp
    t_logp = tt_sh - jnp.log(jnp.sum(jnp.exp(tt_sh), axis=1, keepdims=True))
    t_p = jnp.exp(t_logp)
    soft_cls = jnp.sum(t_p * (t_logp - s_logp)) / B * (temp * temp)

    # ---------------- regression: BCE (PyTorch -100 log clamp) + MSE ----------------
    sr = s_reg_ref[...].astype(f32)
    tr = t_reg_ref[...].astype(f32)
    y = y_reg_ref[...].astype(f32)
    n_reg = float(sr.shape[0] * sr.shape[1])
    log_s = jnp.maximum(jnp.log(sr), -100.0)
    log_1ms = jnp.maximum(jnp.log(1.0 - sr), -100.0)
    reg_loss = -jnp.sum(y * log_s + (1.0 - y) * log_1ms) / n_reg
    soft_reg = jnp.sum((sr - tr) ** 2) / n_reg

    # ---------------- feature adapters: 1x1 conv == per-batch MXU matmul ----------------
    def adapter_mse(x_ref, tref, w_ref, b_ref):
        w = w_ref[...].astype(f32)          # (Cout, Cin)
        bias = b_ref[...].astype(f32)       # (Cout, 1)
        n = float(tref.shape[0] * tref.shape[1] * tref.shape[2])
        total = jnp.float32(0.0)
        for bb in range(x_ref.shape[0]):    # static unroll, B is tiny
            xb = x_ref[bb].astype(f32)      # (Cin, HW)
            tb = tref[bb].astype(f32)       # (Cout, HW)
            a = jnp.dot(w, xb, preferred_element_type=jnp.float32) + bias
            d = a - tb
            total = total + jnp.sum(d * d)
        return total / n

    def identity_mse(x_ref, tref):
        d = x_ref[...].astype(f32) - tref[...].astype(f32)
        n = float(d.shape[0] * d.shape[1] * d.shape[2])
        return jnp.sum(d * d) / n

    f1 = adapter_mse(sf1_ref, tf1_ref, w1_ref, b1_ref)
    f2 = adapter_mse(sf2_ref, tf2_ref, w2_ref, b2_ref)
    f3 = adapter_mse(sf3_ref, tf3_ref, w3_ref, b3_ref)
    f4 = adapter_mse(sf4_ref, tf4_ref, w4_ref, b4_ref)
    f5 = identity_mse(sf5_ref, tf5_ref)

    feature_loss = (feature_weights[0] * f1 + feature_weights[1] * f2 +
                    feature_weights[2] * f3 + feature_weights[3] * f4 +
                    feature_weights[4] * f5)

    hard_loss = cls_loss + reg_loss
    soft_loss = soft_cls + soft_reg + feature_loss
    total_loss = (1.0 - alpha) * hard_loss + alpha * soft_loss

    out_ref[0, 0] = total_loss
    out_ref[0, 1] = cls_loss
    out_ref[0, 2] = reg_loss
    out_ref[0, 3] = soft_cls
    out_ref[0, 4] = soft_reg
    out_ref[0, 5] = feature_loss


# ----------------------------------------------------------------------------- wrapper


def distillation_loss(student_outputs, teacher_outputs, targets, adapter_params,
                      alpha=0.5, temp=4.0,
                      feature_weights=(0.1, 0.2, 0.3, 0.2, 0.2)):
    """adapter_params: 4 (weight (Cout, Cin), bias (Cout,)) pairs; adapter 5 is Identity."""
    s_cls, s_reg, s_f1, s_f2, s_f3, s_f4, s_f5 = student_outputs
    t_cls, t_reg, t_f1, t_f2, t_f3, t_f4, t_f5 = teacher_outputs
    cls_target, reg_target = targets

    def flat(f):  # NCHW -> (B, C, H*W): contiguous, metadata-only reshape (no transpose)
        B_, C_, H_, W_ = f.shape
        return f.reshape(B_, C_, H_ * W_)

    tgt = cls_target.astype(jnp.int32).reshape(-1, 1)

    inputs = [tgt, s_cls, t_cls, s_reg, t_reg, reg_target]
    s_feats = (s_f1, s_f2, s_f3, s_f4)
    t_feats = (t_f1, t_f2, t_f3, t_f4)
    for sf, tf, (w, b) in zip(s_feats, t_feats, adapter_params):
        inputs += [flat(sf), flat(tf), w, b.reshape(-1, 1)]
    inputs += [flat(s_f5), flat(t_f5)]

    vmem = pl.BlockSpec(memory_space=pltpu.MemorySpace.VMEM)
    out = pl.pallas_call(
        functools.partial(
            _fused_loss_kernel,
            alpha=float(alpha), temp=float(temp),
            feature_weights=tuple(float(w) for w in feature_weights)),
        out_shape=jax.ShapeDtypeStruct((1, 6), jnp.float32),
        in_specs=[vmem] * len(inputs),
        out_specs=pl.BlockSpec(memory_space=pltpu.MemorySpace.SMEM),
    )(*inputs)

    return (out[0, 0], out[0, 1], out[0, 2], out[0, 3], out[0, 4], out[0, 5])


# ----------------------------------------------------------------------------- reference (pure JAX)


def _ref_loss(student_outputs, teacher_outputs, targets, adapter_params,
              alpha=0.5, temp=4.0, feature_weights=(0.1, 0.2, 0.3, 0.2, 0.2)):
    s_cls, s_reg, s_f1, s_f2, s_f3, s_f4, s_f5 = student_outputs
    t_cls, t_reg, t_f1, t_f2, t_f3, t_f4, t_f5 = teacher_outputs
    cls_target, reg_target = targets
    B = s_cls.shape[0]

    log_sm = jax.nn.log_softmax(s_cls, axis=1)
    cls_loss = -jnp.mean(jnp.take_along_axis(log_sm, cls_target[:, None], axis=1))
    reg_loss = -jnp.mean(reg_target * jnp.log(s_reg)
                         + (1.0 - reg_target) * jnp.log(1.0 - s_reg))
    hard = cls_loss + reg_loss

    s_lp = jax.nn.log_softmax(s_cls / temp, axis=1)
    t_p = jax.nn.softmax(t_cls / temp, axis=1)
    soft_cls = jnp.sum(t_p * (jnp.log(t_p) - s_lp)) / B * temp ** 2
    soft_reg = jnp.mean((s_reg - t_reg) ** 2)

    def adapt(x, w, b):   # w: (Cout, Cin) like a squeezed PyTorch 1x1 conv weight
        return jnp.einsum("bchw,oc->bohw", x, w) + b[None, :, None, None]

    s_feats = [s_f1, s_f2, s_f3, s_f4]
    t_feats = [t_f1, t_f2, t_f3, t_f4]
    f_losses = [jnp.mean((adapt(sf, w, b) - tf) ** 2)
                for sf, tf, (w, b) in zip(s_feats, t_feats, adapter_params)]
    f_losses.append(jnp.mean((s_f5 - t_f5) ** 2))  # nn.Identity adapter
    feat = sum(w * l for w, l in zip(feature_weights, f_losses))
    soft = soft_cls + soft_reg + feat
    total = (1.0 - alpha) * hard + alpha * soft
    return total, cls_loss, reg_loss, soft_cls, soft_reg, feat


# ----------------------------------------------------------------------------- main


if __name__ == "__main__":
    key = jax.random.PRNGKey(0)
    keys = jax.random.split(key, 40)
    ki = iter(keys)

    B, NUM_CLASSES, NUM_REG = 2, 10, 8

    # student / teacher heads
    s_cls = jax.random.normal(next(ki), (B, NUM_CLASSES), jnp.float32)
    t_cls = jax.random.normal(next(ki), (B, NUM_CLASSES), jnp.float32)
    s_reg = jax.nn.sigmoid(jax.random.normal(next(ki), (B, NUM_REG), jnp.float32))
    t_reg = jax.nn.sigmoid(jax.random.normal(next(ki), (B, NUM_REG), jnp.float32))

    # feature maps (NCHW) matching the module's adapter channel counts
    feat_dims = [  # (Cin_student, Cout_teacher, H, W)
        (32, 16, 8, 8),
        (32, 24, 8, 8),
        (64, 40, 4, 4),
        (96, 112, 4, 4),
        (64, 64, 4, 4),   # identity adapter: same channels
    ]
    s_feats, t_feats = [], []
    for cin, cout, h, w in feat_dims:
        s_feats.append(jax.random.normal(next(ki), (B, cin, h, w), jnp.float32))
        t_feats.append(jax.random.normal(next(ki), (B, cout, h, w), jnp.float32))

    # adapter parameters in native PyTorch layout: weight (Cout, Cin), bias (Cout,)
    adapter_params = []
    for cin, cout, _, _ in feat_dims[:4]:
        bound = 1.0 / (cin ** 0.5)
        w = jax.random.uniform(next(ki), (cout, cin), jnp.float32, -bound, bound)
        b = jax.random.uniform(next(ki), (cout,), jnp.float32, -bound, bound)
        adapter_params.append((w, b))

    cls_target = jax.random.randint(next(ki), (B,), 0, NUM_CLASSES)
    reg_target = jax.random.uniform(next(ki), (B, NUM_REG), jnp.float32)

    student_outputs = (s_cls, s_reg, *s_feats)
    teacher_outputs = (t_cls, t_reg, *t_feats)
    targets = (cls_target, reg_target)

    outs = distillation_loss(student_outputs, teacher_outputs, targets, adapter_params)
    outs = jax.block_until_ready(outs)

    refs = _ref_loss(student_outputs, teacher_outputs, targets, adapter_params)
    refs = jax.block_until_ready(refs)

    for o, r in zip(outs, refs):
        o, r = float(o), float(r)
        assert abs(o - r) <= 1e-3 + 1e-3 * abs(r), (o, r)

    print("KERNEL_OK")
</pallas_src>

<mosaic_0001>
module attributes {stable_mosaic.version = 11 : i64} {
  func.func @_fused_loss_kernel(%arg0: memref<2x1xi32, #tpu.memory_space<vmem>>, %arg1: memref<2x10xf32, #tpu.memory_space<vmem>>, %arg2: memref<2x10xf32, #tpu.memory_space<vmem>>, %arg3: memref<2x8xf32, #tpu.memory_space<vmem>>, %arg4: memref<2x8xf32, #tpu.memory_space<vmem>>, %arg5: memref<2x8xf32, #tpu.memory_space<vmem>>, %arg6: memref<2x32x64xf32, #tpu.memory_space<vmem>>, %arg7: memref<2x16x64xf32, #tpu.memory_space<vmem>>, %arg8: memref<16x32xf32, #tpu.memory_space<vmem>>, %arg9: memref<16x1xf32, #tpu.memory_space<vmem>>, %arg10: memref<2x32x64xf32, #tpu.memory_space<vmem>>, %arg11: memref<2x24x64xf32, #tpu.memory_space<vmem>>, %arg12: memref<24x32xf32, #tpu.memory_space<vmem>>, %arg13: memref<24x1xf32, #tpu.memory_space<vmem>>, %arg14: memref<2x64x16xf32, #tpu.memory_space<vmem>>, %arg15: memref<2x40x16xf32, #tpu.memory_space<vmem>>, %arg16: memref<40x64xf32, #tpu.memory_space<vmem>>, %arg17: memref<40x1xf32, #tpu.memory_space<vmem>>, %arg18: memref<2x96x16xf32, #tpu.memory_space<vmem>>, %arg19: memref<2x112x16xf32, #tpu.memory_space<vmem>>, %arg20: memref<112x96xf32, #tpu.memory_space<vmem>>, %arg21: memref<112x1xf32, #tpu.memory_space<vmem>>, %arg22: memref<2x64x16xf32, #tpu.memory_space<vmem>>, %arg23: memref<2x64x16xf32, #tpu.memory_space<vmem>>, %arg24: memref<1x6xf32, #tpu.memory_space<smem>>) attributes {dimension_semantics = [], scalar_prefetch = 0 : i64, scratch_operands = 0 : i64, tpu.core_type = #tpu.core_type<tc>} {
    %c0 = arith.constant 0 : index
    %c0_0 = arith.constant 0 : index
    %0 = vector.load %arg1[%c0, %c0_0] : memref<2x10xf32, #tpu.memory_space<vmem>>, vector<2x10xf32>
    %c0_1 = arith.constant 0 : index
    %c0_2 = arith.constant 0 : index
    %1 = vector.load %arg2[%c0_1, %c0_2] : memref<2x10xf32, #tpu.memory_space<vmem>>, vector<2x10xf32>
    %cst = arith.constant dense<0xFF800000> : vector<2xf32>
    %2 = vector.multi_reduction <maximumf>, %0, %cst [1] : vector<2x10xf32> to vector<2xf32>
    %3 = vector.shape_cast %2 : vector<2xf32> to vector<2x1xf32>
    %4 = vector.broadcast %3 : vector<2x1xf32> to vector<2x10xf32>
    %5 = arith.subf %0, %4 : vector<2x10xf32>
    %6 = math.exp %5 : vector<2x10xf32>
    %cst_3 = arith.constant dense<0.000000e+00> : vector<2xf32>
    %7 = vector.multi_reduction <add>, %6, %cst_3 [1] : vector<2x10xf32> to vector<2xf32>
    %8 = vector.shape_cast %7 : vector<2xf32> to vector<2x1xf32>
    %9 = math.log %8 : vector<2x1xf32>
    %10 = vector.broadcast %9 : vector<2x1xf32> to vector<2x10xf32>
    %11 = arith.subf %5, %10 : vector<2x10xf32>
    %12 = tpu.iota {dimensions = array<i32: 1>} : vector<2x10xi32>
    %c0_4 = arith.constant 0 : index
    %c0_5 = arith.constant 0 : index
    %13 = vector.load %arg0[%c0_4, %c0_5] : memref<2x1xi32, #tpu.memory_space<vmem>>, vector<2x1xi32>
    %14 = vector.broadcast %13 : vector<2x1xi32> to vector<2x10xi32>
    %15 = arith.cmpi eq, %12, %14 : vector<2x10xi32>
    %cst_6 = arith.constant 0.000000e+00 : f32
    %16 = vector.broadcast %cst_6 : f32 to vector<2x10xf32>
    %17 = arith.select %15, %11, %16 : vector<2x10xi1>, vector<2x10xf32>
    %18 = vector.shape_cast %17 : vector<2x10xf32> to vector<1x2x10xf32>
    %cst_7 = arith.constant dense<0.000000e+00> : vector<1xf32>
    %19 = vector.multi_reduction <add>, %18, %cst_7 [1, 2] : vector<1x2x10xf32> to vector<1xf32>
    %20 = vector.shape_cast %19 : vector<1xf32> to vector<1x1x1xf32>
    %21 = vector.extract %20[0, 0, 0] : f32 from vector<1x1x1xf32>
    %cst_8 = arith.constant 0.000000e+00 : f32
    %22 = arith.subf %cst_8, %21 : f32
    %cst_9 = arith.constant 2.000000e+00 : f32
    %23 = arith.divf %22, %cst_9 : f32
    %cst_10 = arith.constant 4.000000e+00 : f32
    %24 = vector.broadcast %cst_10 : f32 to vector<2x10xf32>
    %25 = arith.divf %5, %24 : vector<2x10xf32>
    %26 = math.exp %25 : vector<2x10xf32>
    %cst_11 = arith.constant dense<0.000000e+00> : vector<2xf32>
    %27 = vector.multi_reduction <add>, %26, %cst_11 [1] : vector<2x10xf32> to vector<2xf32>
    %28 = vector.shape_cast %27 : vector<2xf32> to vector<2x1xf32>
    %29 = math.log %28 : vector<2x1xf32>
    %30 = vector.broadcast %29 : vector<2x1xf32> to vector<2x10xf32>
    %31 = arith.subf %25, %30 : vector<2x10xf32>
    %cst_12 = arith.constant dense<0xFF800000> : vector<2xf32>
    %32 = vector.multi_reduction <maximumf>, %1, %cst_12 [1] : vector<2x10xf32> to vector<2xf32>
    %33 = vector.shape_cast %32 : vector<2xf32> to vector<2x1xf32>
    %34 = vector.broadcast %33 : vector<2x1xf32> to vector<2x10xf32>
    %35 = arith.subf %1, %34 : vector<2x10xf32>
    %cst_13 = arith.constant 4.000000e+00 : f32
    %36 = vector.broadcast %cst_13 : f32 to vector<2x10xf32>
    %37 = arith.divf %35, %36 : vector<2x10xf32>
    %38 = math.exp %37 : vector<2x10xf32>
    %cst_14 = arith.constant dense<0.000000e+00> : vector<2xf32>
    %39 = vector.multi_reduction <add>, %38, %cst_14 [1] : vector<2x10xf32> to vector<2xf32>
    %40 = vector.shape_cast %39 : vector<2xf32> to vector<2x1xf32>
    %41 = math.log %40 : vector<2x1xf32>
    %42 = vector.broadcast %41 : vector<2x1xf32> to vector<2x10xf32>
    %43 = arith.subf %37, %42 : vector<2x10xf32>
    %44 = math.exp %43 : vector<2x10xf32>
    %45 = arith.subf %43, %31 : vector<2x10xf32>
    %46 = arith.mulf %44, %45 : vector<2x10xf32>
    %47 = vector.shape_cast %46 : vector<2x10xf32> to vector<1x2x10xf32>
    %cst_15 = arith.constant dense<0.000000e+00> : vector<1xf32>
    %48 = vector.multi_reduction <add>, %47, %cst_15 [1, 2] : vector<1x2x10xf32> to vector<1xf32>
    %49 = vector.shape_cast %48 : vector<1xf32> to vector<1x1x1xf32>
    %50 = vector.extract %49[0, 0, 0] : f32 from vector<1x1x1xf32>
    %cst_16 = arith.constant 2.000000e+00 : f32
    %51 = arith.divf %50, %cst_16 : f32
    %cst_17 = arith.constant 1.600000e+01 : f32
    %52 = arith.mulf %51, %cst_17 : f32
    %c0_18 = arith.constant 0 : index
    %c0_19 = arith.constant 0 : index
    %53 = vector.load %arg3[%c0_18, %c0_19] : memref<2x8xf32, #tpu.memory_space<vmem>>, vector<2x8xf32>
    %c0_20 = arith.constant 0 : index
    %c0_21 = arith.constant 0 : index
    %54 = vector.load %arg4[%c0_20, %c0_21] : memref<2x8xf32, #tpu.memory_space<vmem>>, vector<2x8xf32>
    %c0_22 = arith.constant 0 : index
    %c0_23 = arith.constant 0 : index
    %55 = vector.load %arg5[%c0_22, %c0_23] : memref<2x8xf32, #tpu.memory_space<vmem>>, vector<2x8xf32>
    %56 = math.log %53 : vector<2x8xf32>
    %cst_24 = arith.constant -1.000000e+02 : f32
    %57 = vector.broadcast %cst_24 : f32 to vector<2x8xf32>
    %58 = arith.maximumf %56, %57 : vector<2x8xf32>
    %cst_25 = arith.constant 1.000000e+00 : f32
    %59 = vector.broadcast %cst_25 : f32 to vector<2x8xf32>
    %60 = arith.subf %59, %53 : vector<2x8xf32>
    %61 = math.log %60 : vector<2x8xf32>
    %cst_26 = arith.constant -1.000000e+02 : f32
    %62 = vector.broadcast %cst_26 : f32 to vector<2x8xf32>
    %63 = arith.maximumf %61, %62 : vector<2x8xf32>
    %64 = arith.mulf %55, %58 : vector<2x8xf32>
    %cst_27 = arith.constant 1.000000e+00 : f32
    %65 = vector.broadcast %cst_27 : f32 to vector<2x8xf32>
    %66 = arith.subf %65, %55 : vector<2x8xf32>
    %67 = arith.mulf %66, %63 : vector<2x8xf32>
    %68 = arith.addf %64, %67 : vector<2x8xf32>
    %69 = vector.shape_cast %68 : vector<2x8xf32> to vector<1x2x8xf32>
    %cst_28 = arith.constant dense<0.000000e+00> : vector<1xf32>
    %70 = vector.multi_reduction <add>, %69, %cst_28 [1, 2] : vector<1x2x8xf32> to vector<1xf32>
    %71 = vector.shape_cast %70 : vector<1xf32> to vector<1x1x1xf32>
    %72 = vector.extract %71[0, 0, 0] : f32 from vector<1x1x1xf32>
    %cst_29 = arith.constant 0.000000e+00 : f32
    %73 = arith.subf %cst_29, %72 : f32
    %cst_30 = arith.constant 1.600000e+01 : f32
    %74 = arith.divf %73, %cst_30 : f32
    %75 = arith.subf %53, %54 : vector<2x8xf32>
    %76 = arith.mulf %75, %75 : vector<2x8xf32>
    %77 = vector.shape_cast %76 : vector<2x8xf32> to vector<1x2x8xf32>
    %cst_31 = arith.constant dense<0.000000e+00> : vector<1xf32>
    %78 = vector.multi_reduction <add>, %77, %cst_31 [1, 2] : vector<1x2x8xf32> to vector<1xf32>
    %79 = vector.shape_cast %78 : vector<1xf32> to vector<1x1x1xf32>
    %80 = vector.extract %79[0, 0, 0] : f32 from vector<1x1x1xf32>
    %cst_32 = arith.constant 1.600000e+01 : f32
    %81 = arith.divf %80, %cst_32 : f32
    %c0_33 = arith.constant 0 : index
    %c0_34 = arith.constant 0 : index
    %82 = vector.load %arg8[%c0_33, %c0_34] : memref<16x32xf32, #tpu.memory_space<vmem>>, vector<16x32xf32>
    %c0_35 = arith.constant 0 : index
    %c0_36 = arith.constant 0 : index
    %83 = vector.load %arg9[%c0_35, %c0_36] : memref<16x1xf32, #tpu.memory_space<vmem>>, vector<16x1xf32>
    %c0_37 = arith.constant 0 : index
    %c0_38 = arith.constant 0 : index
    %c0_39 = arith.constant 0 : index
    %84 = vector.load %arg6[%c0_37, %c0_38, %c0_39] : memref<2x32x64xf32, #tpu.memory_space<vmem>>, vector<1x32x64xf32>
    %85 = vector.shape_cast %84 : vector<1x32x64xf32> to vector<32x64xf32>
    %c0_40 = arith.constant 0 : index
    %c0_41 = arith.constant 0 : index
    %c0_42 = arith.constant 0 : index
    %86 = vector.load %arg7[%c0_40, %c0_41, %c0_42] : memref<2x16x64xf32, #tpu.memory_space<vmem>>, vector<1x16x64xf32>
    %87 = vector.shape_cast %86 : vector<1x16x64xf32> to vector<16x64xf32>
    %cst_43 = arith.constant dense<0.000000e+00> : vector<16x64xf32>
    %88 = tpu.matmul %82, %85, %cst_43 {dimension_numbers = #tpu.dot_dimension_numbers<[1], [0], [0], [1], [0, 0, 1, 1], [], []>} : vector<16x32xf32>, vector<32x64xf32>, vector<16x64xf32> -> vector<16x64xf32>
    %89 = vector.broadcast %83 : vector<16x1xf32> to vector<16x64xf32>
    %90 = arith.addf %88, %89 : vector<16x64xf32>
    %91 = arith.subf %90, %87 : vector<16x64xf32>
    %92 = arith.mulf %91, %91 : vector<16x64xf32>
    %93 = vector.shape_cast %92 : vector<16x64xf32> to vector<1x16x64xf32>
    %cst_44 = arith.constant dense<0.000000e+00> : vector<1xf32>
    %94 = vector.multi_reduction <add>, %93, %cst_44 [1, 2] : vector<1x16x64xf32> to vector<1xf32>
    %95 = vector.shape_cast %94 : vector<1xf32> to vector<1x1x1xf32>
    %96 = vector.extract %95[0, 0, 0] : f32 from vector<1x1x1xf32>
    %cst_45 = arith.constant 0.000000e+00 : f32
    %97 = arith.addf %cst_45, %96 : f32
    %c1 = arith.constant 1 : index
    %c0_46 = arith.constant 0 : index
    %c0_47 = arith.constant 0 : index
    %98 = vector.load %arg6[%c1, %c0_46, %c0_47] : memref<2x32x64xf32, #tpu.memory_space<vmem>>, vector<1x32x64xf32>
    %99 = vector.shape_cast %98 : vector<1x32x64xf32> to vector<32x64xf32>
    %c1_48 = arith.constant 1 : index
    %c0_49 = arith.constant 0 : index
    %c0_50 = arith.constant 0 : index
    %100 = vector.load %arg7[%c1_48, %c0_49, %c0_50] : memref<2x16x64xf32, #tpu.memory_space<vmem>>, vector<1x16x64xf32>
    %101 = vector.shape_cast %100 : vector<1x16x64xf32> to vector<16x64xf32>
    %cst_51 = arith.constant dense<0.000000e+00> : vector<16x64xf32>
    %102 = tpu.matmul %82, %99, %cst_51 {dimension_numbers = #tpu.dot_dimension_numbers<[1], [0], [0], [1], [0, 0, 1, 1], [], []>} : vector<16x32xf32>, vector<32x64xf32>, vector<16x64xf32> -> vector<16x64xf32>
    %103 = vector.broadcast %83 : vector<16x1xf32> to vector<16x64xf32>
    %104 = arith.addf %102, %103 : vector<16x64xf32>
    %105 = arith.subf %104, %101 : vector<16x64xf32>
    %106 = arith.mulf %105, %105 : vector<16x64xf32>
    %107 = vector.shape_cast %106 : vector<16x64xf32> to vector<1x16x64xf32>
    %cst_52 = arith.constant dense<0.000000e+00> : vector<1xf32>
    %108 = vector.multi_reduction <add>, %107, %cst_52 [1, 2] : vector<1x16x64xf32> to vector<1xf32>
    %109 = vector.shape_cast %108 : vector<1xf32> to vector<1x1x1xf32>
    %110 = vector.extract %109[0, 0, 0] : f32 from vector<1x1x1xf32>
    %111 = arith.addf %97, %110 : f32
    %cst_53 = arith.constant 2.048000e+03 : f32
    %112 = arith.divf %111, %cst_53 : f32
    %c0_54 = arith.constant 0 : index
    %c0_55 = arith.constant 0 : index
    %113 = vector.load %arg12[%c0_54, %c0_55] : memref<24x32xf32, #tpu.memory_space<vmem>>, vector<24x32xf32>
    %c0_56 = arith.constant 0 : index
    %c0_57 = arith.constant 0 : index
    %114 = vector.load %arg13[%c0_56, %c0_57] : memref<24x1xf32, #tpu.memory_space<vmem>>, vector<24x1xf32>
    %c0_58 = arith.constant 0 : index
    %c0_59 = arith.constant 0 : index
    %c0_60 = arith.constant 0 : index
    %115 = vector.load %arg10[%c0_58, %c0_59, %c0_60] : memref<2x32x64xf32, #tpu.memory_space<vmem>>, vector<1x32x64xf32>
    %116 = vector.shape_cast %115 : vector<1x32x64xf32> to vector<32x64xf32>
    %c0_61 = arith.constant 0 : index
    %c0_62 = arith.constant 0 : index
    %c0_63 = arith.constant 0 : index
    %117 = vector.load %arg11[%c0_61, %c0_62, %c0_63] : memref<2x24x64xf32, #tpu.memory_space<vmem>>, vector<1x24x64xf32>
    %118 = vector.shape_cast %117 : vector<1x24x64xf32> to vector<24x64xf32>
    %cst_64 = arith.constant dense<0.000000e+00> : vector<24x64xf32>
    %119 = tpu.matmul %113, %116, %cst_64 {dimension_numbers = #tpu.dot_dimension_numbers<[1], [0], [0], [1], [0, 0, 1, 1], [], []>} : vector<24x32xf32>, vector<32x64xf32>, vector<24x64xf32> -> vector<24x64xf32>
    %120 = vector.broadcast %114 : vector<24x1xf32> to vector<24x64xf32>
    %121 = arith.addf %119, %120 : vector<24x64xf32>
    %122 = arith.subf %121, %118 : vector<24x64xf32>
    %123 = arith.mulf %122, %122 : vector<24x64xf32>
    %124 = vector.shape_cast %123 : vector<24x64xf32> to vector<1x24x64xf32>
    %cst_65 = arith.constant dense<0.000000e+00> : vector<1xf32>
    %125 = vector.multi_reduction <add>, %124, %cst_65 [1, 2] : vector<1x24x64xf32> to vector<1xf32>
    %126 = vector.shape_cast %125 : vector<1xf32> to vector<1x1x1xf32>
    %127 = vector.extract %126[0, 0, 0] : f32 from vector<1x1x1xf32>
    %cst_66 = arith.constant 0.000000e+00 : f32
    %128 = arith.addf %cst_66, %127 : f32
    %c1_67 = arith.constant 1 : index
    %c0_68 = arith.constant 0 : index
    %c0_69 = arith.constant 0 : index
    %129 = vector.load %arg10[%c1_67, %c0_68, %c0_69] : memref<2x32x64xf32, #tpu.memory_space<vmem>>, vector<1x32x64xf32>
    %130 = vector.shape_cast %129 : vector<1x32x64xf32> to vector<32x64xf32>
    %c1_70 = arith.constant 1 : index
    %c0_71 = arith.constant 0 : index
    %c0_72 = arith.constant 0 : index
    %131 = vector.load %arg11[%c1_70, %c0_71, %c0_72] : memref<2x24x64xf32, #tpu.memory_space<vmem>>, vector<1x24x64xf32>
    %132 = vector.shape_cast %131 : vector<1x24x64xf32> to vector<24x64xf32>
    %cst_73 = arith.constant dense<0.000000e+00> : vector<24x64xf32>
    %133 = tpu.matmul %113, %130, %cst_73 {dimension_numbers = #tpu.dot_dimension_numbers<[1], [0], [0], [1], [0, 0, 1, 1], [], []>} : vector<24x32xf32>, vector<32x64xf32>, vector<24x64xf32> -> vector<24x64xf32>
    %134 = vector.broadcast %114 : vector<24x1xf32> to vector<24x64xf32>
    %135 = arith.addf %133, %134 : vector<24x64xf32>
    %136 = arith.subf %135, %132 : vector<24x64xf32>
    %137 = arith.mulf %136, %136 : vector<24x64xf32>
    %138 = vector.shape_cast %137 : vector<24x64xf32> to vector<1x24x64xf32>
    %cst_74 = arith.constant dense<0.000000e+00> : vector<1xf32>
    %139 = vector.multi_reduction <add>, %138, %cst_74 [1, 2] : vector<1x24x64xf32> to vector<1xf32>
    %140 = vector.shape_cast %139 : vector<1xf32> to vector<1x1x1xf32>
    %141 = vector.extract %140[0, 0, 0] : f32 from vector<1x1x1xf32>
    %142 = arith.addf %128, %141 : f32
    %cst_75 = arith.constant 3.072000e+03 : f32
    %143 = arith.divf %142, %cst_75 : f32
    %c0_76 = arith.constant 0 : index
    %c0_77 = arith.constant 0 : index
    %144 = vector.load %arg16[%c0_76, %c0_77] : memref<40x64xf32, #tpu.memory_space<vmem>>, vector<40x64xf32>
    %c0_78 = arith.constant 0 : index
    %c0_79 = arith.constant 0 : index
    %145 = vector.load %arg17[%c0_78, %c0_79] : memref<40x1xf32, #tpu.memory_space<vmem>>, vector<40x1xf32>
    %c0_80 = arith.constant 0 : index
    %c0_81 = arith.constant 0 : index
    %c0_82 = arith.constant 0 : index
    %146 = vector.load %arg14[%c0_80, %c0_81, %c0_82] : memref<2x64x16xf32, #tpu.memory_space<vmem>>, vector<1x64x16xf32>
    %147 = vector.shape_cast %146 : vector<1x64x16xf32> to vector<64x16xf32>
    %c0_83 = arith.constant 0 : index
    %c0_84 = arith.constant 0 : index
    %c0_85 = arith.constant 0 : index
    %148 = vector.load %arg15[%c0_83, %c0_84, %c0_85] : memref<2x40x16xf32, #tpu.memory_space<vmem>>, vector<1x40x16xf32>
    %149 = vector.shape_cast %148 : vector<1x40x16xf32> to vector<40x16xf32>
    %cst_86 = arith.constant dense<0.000000e+00> : vector<40x16xf32>
    %150 = tpu.matmul %144, %147, %cst_86 {dimension_numbers = #tpu.dot_dimension_numbers<[1], [0], [0], [1], [0, 0, 1, 1], [], []>} : vector<40x64xf32>, vector<64x16xf32>, vector<40x16xf32> -> vector<40x16xf32>
    %151 = vector.broadcast %145 : vector<40x1xf32> to vector<40x16xf32>
    %152 = arith.addf %150, %151 : vector<40x16xf32>
    %153 = arith.subf %152, %149 : vector<40x16xf32>
    %154 = arith.mulf %153, %153 : vector<40x16xf32>
    %155 = vector.shape_cast %154 : vector<40x16xf32> to vector<1x40x16xf32>
    %cst_87 = arith.constant dense<0.000000e+00> : vector<1xf32>
    %156 = vector.multi_reduction <add>, %155, %cst_87 [1, 2] : vector<1x40x16xf32> to vector<1xf32>
    %157 = vector.shape_cast %156 : vector<1xf32> to vector<1x1x1xf32>
    %158 = vector.extract %157[0, 0, 0] : f32 from vector<1x1x1xf32>
    %cst_88 = arith.constant 0.000000e+00 : f32
    %159 = arith.addf %cst_88, %158 : f32
    %c1_89 = arith.constant 1 : index
    %c0_90 = arith.constant 0 : index
    %c0_91 = arith.constant 0 : index
    %160 = vector.load %arg14[%c1_89, %c0_90, %c0_91] : memref<2x64x16xf32, #tpu.memory_space<vmem>>, vector<1x64x16xf32>
    %161 = vector.shape_cast %160 : vector<1x64x16xf32> to vector<64x16xf32>
    %c1_92 = arith.constant 1 : index
    %c0_93 = arith.constant 0 : index
    %c0_94 = arith.constant 0 : index
    %162 = vector.load %arg15[%c1_92, %c0_93, %c0_94] : memref<2x40x16xf32, #tpu.memory_space<vmem>>, vector<1x40x16xf32>
    %163 = vector.shape_cast %162 : vector<1x40x16xf32> to vector<40x16xf32>
    %cst_95 = arith.constant dense<0.000000e+00> : vector<40x16xf32>
    %164 = tpu.matmul %144, %161, %cst_95 {dimension_numbers = #tpu.dot_dimension_numbers<[1], [0], [0], [1], [0, 0, 1, 1], [], []>} : vector<40x64xf32>, vector<64x16xf32>, vector<40x16xf32> -> vector<40x16xf32>
    %165 = vector.broadcast %145 : vector<40x1xf32> to vector<40x16xf32>
    %166 = arith.addf %164, %165 : vector<40x16xf32>
    %167 = arith.subf %166, %163 : vector<40x16xf32>
    %168 = arith.mulf %167, %167 : vector<40x16xf32>
    %169 = vector.shape_cast %168 : vector<40x16xf32> to vector<1x40x16xf32>
    %cst_96 = arith.constant dense<0.000000e+00> : vector<1xf32>
    %170 = vector.multi_reduction <add>, %169, %cst_96 [1, 2] : vector<1x40x16xf32> to vector<1xf32>
    %171 = vector.shape_cast %170 : vector<1xf32> to vector<1x1x1xf32>
    %172 = vector.extract %171[0, 0, 0] : f32 from vector<1x1x1xf32>
    %173 = arith.addf %159, %172 : f32
    %cst_97 = arith.constant 1.280000e+03 : f32
    %174 = arith.divf %173, %cst_97 : f32
    %c0_98 = arith.constant 0 : index
    %c0_99 = arith.constant 0 : index
    %175 = vector.load %arg20[%c0_98, %c0_99] : memref<112x96xf32, #tpu.memory_space<vmem>>, vector<112x96xf32>
    %c0_100 = arith.constant 0 : index
    %c0_101 = arith.constant 0 : index
    %176 = vector.load %arg21[%c0_100, %c0_101] : memref<112x1xf32, #tpu.memory_space<vmem>>, vector<112x1xf32>
    %c0_102 = arith.constant 0 : index
    %c0_103 = arith.constant 0 : index
    %c0_104 = arith.constant 0 : index
    %177 = vector.load %arg18[%c0_102, %c0_103, %c0_104] : memref<2x96x16xf32, #tpu.memory_space<vmem>>, vector<1x96x16xf32>
    %178 = vector.shape_cast %177 : vector<1x96x16xf32> to vector<96x16xf32>
    %c0_105 = arith.constant 0 : index
    %c0_106 = arith.constant 0 : index
    %c0_107 = arith.constant 0 : index
    %179 = vector.load %arg19[%c0_105, %c0_106, %c0_107] : memref<2x112x16xf32, #tpu.memory_space<vmem>>, vector<1x112x16xf32>
    %180 = vector.shape_cast %179 : vector<1x112x16xf32> to vector<112x16xf32>
    %cst_108 = arith.constant dense<0.000000e+00> : vector<112x16xf32>
    %181 = tpu.matmul %175, %178, %cst_108 {dimension_numbers = #tpu.dot_dimension_numbers<[1], [0], [0], [1], [0, 0, 1, 1], [], []>} : vector<112x96xf32>, vector<96x16xf32>, vector<112x16xf32> -> vector<112x16xf32>
    %182 = vector.broadcast %176 : vector<112x1xf32> to vector<112x16xf32>
    %183 = arith.addf %181, %182 : vector<112x16xf32>
    %184 = arith.subf %183, %180 : vector<112x16xf32>
    %185 = arith.mulf %184, %184 : vector<112x16xf32>
    %186 = vector.shape_cast %185 : vector<112x16xf32> to vector<1x112x16xf32>
    %cst_109 = arith.constant dense<0.000000e+00> : vector<1xf32>
    %187 = vector.multi_reduction <add>, %186, %cst_109 [1, 2] : vector<1x112x16xf32> to vector<1xf32>
    %188 = vector.shape_cast %187 : vector<1xf32> to vector<1x1x1xf32>
    %189 = vector.extract %188[0, 0, 0] : f32 from vector<1x1x1xf32>
    %cst_110 = arith.constant 0.000000e+00 : f32
    %190 = arith.addf %cst_110, %189 : f32
    %c1_111 = arith.constant 1 : index
    %c0_112 = arith.constant 0 : index
    %c0_113 = arith.constant 0 : index
    %191 = vector.load %arg18[%c1_111, %c0_112, %c0_113] : memref<2x96x16xf32, #tpu.memory_space<vmem>>, vector<1x96x16xf32>
    %192 = vector.shape_cast %191 : vector<1x96x16xf32> to vector<96x16xf32>
    %c1_114 = arith.constant 1 : index
    %c0_115 = arith.constant 0 : index
    %c0_116 = arith.constant 0 : index
    %193 = vector.load %arg19[%c1_114, %c0_115, %c0_116] : memref<2x112x16xf32, #tpu.memory_space<vmem>>, vector<1x112x16xf32>
    %194 = vector.shape_cast %193 : vector<1x112x16xf32> to vector<112x16xf32>
    %cst_117 = arith.constant dense<0.000000e+00> : vector<112x16xf32>
    %195 = tpu.matmul %175, %192, %cst_117 {dimension_numbers = #tpu.dot_dimension_numbers<[1], [0], [0], [1], [0, 0, 1, 1], [], []>} : vector<112x96xf32>, vector<96x16xf32>, vector<112x16xf32> -> vector<112x16xf32>
    %196 = vector.broadcast %176 : vector<112x1xf32> to vector<112x16xf32>
    %197 = arith.addf %195, %196 : vector<112x16xf32>
    %198 = arith.subf %197, %194 : vector<112x16xf32>
    %199 = arith.mulf %198, %198 : vector<112x16xf32>
    %200 = vector.shape_cast %199 : vector<112x16xf32> to vector<1x112x16xf32>
    %cst_118 = arith.constant dense<0.000000e+00> : vector<1xf32>
    %201 = vector.multi_reduction <add>, %200, %cst_118 [1, 2] : vector<1x112x16xf32> to vector<1xf32>
    %202 = vector.shape_cast %201 : vector<1xf32> to vector<1x1x1xf32>
    %203 = vector.extract %202[0, 0, 0] : f32 from vector<1x1x1xf32>
    %204 = arith.addf %190, %203 : f32
    %cst_119 = arith.constant 3.584000e+03 : f32
    %205 = arith.divf %204, %cst_119 : f32
    %c0_120 = arith.constant 0 : index
    %c0_121 = arith.constant 0 : index
    %c0_122 = arith.constant 0 : index
    %206 = vector.load %arg22[%c0_120, %c0_121, %c0_122] : memref<2x64x16xf32, #tpu.memory_space<vmem>>, vector<2x64x16xf32>
    %c0_123 = arith.constant 0 : index
    %c0_124 = arith.constant 0 : index
    %c0_125 = arith.constant 0 : index
    %207 = vector.load %arg23[%c0_123, %c0_124, %c0_125] : memref<2x64x16xf32, #tpu.memory_space<vmem>>, vector<2x64x16xf32>
    %208 = arith.subf %206, %207 : vector<2x64x16xf32>
    %209 = arith.mulf %208, %208 : vector<2x64x16xf32>
    %210 = vector.shape_cast %209 : vector<2x64x16xf32> to vector<1x2x64x16xf32>
    %cst_126 = arith.constant dense<0.000000e+00> : vector<1xf32>
    %211 = vector.multi_reduction <add>, %210, %cst_126 [1, 2, 3] : vector<1x2x64x16xf32> to vector<1xf32>
    %212 = vector.shape_cast %211 : vector<1xf32> to vector<1x1x1x1xf32>
    %213 = vector.extract %212[0, 0, 0, 0] : f32 from vector<1x1x1x1xf32>
    %cst_127 = arith.constant 2.048000e+03 : f32
    %214 = arith.divf %213, %cst_127 : f32
    %cst_128 = arith.constant 1.000000e-01 : f32
    %215 = arith.mulf %cst_128, %112 : f32
    %cst_129 = arith.constant 2.000000e-01 : f32
    %216 = arith.mulf %cst_129, %143 : f32
    %217 = arith.addf %215, %216 : f32
    %cst_130 = arith.constant 3.000000e-01 : f32
    %218 = arith.mulf %cst_130, %174 : f32
    %219 = arith.addf %217, %218 : f32
    %cst_131 = arith.constant 2.000000e-01 : f32
    %220 = arith.mulf %cst_131, %205 : f32
    %221 = arith.addf %219, %220 : f32
    %cst_132 = arith.constant 2.000000e-01 : f32
    %222 = arith.mulf %cst_132, %214 : f32
    %223 = arith.addf %221, %222 : f32
    %224 = arith.addf %23, %74 : f32
    %225 = arith.addf %52, %81 : f32
    %226 = arith.addf %225, %223 : f32
    %cst_133 = arith.constant 5.000000e-01 : f32
    %227 = arith.mulf %cst_133, %224 : f32
    %cst_134 = arith.constant 5.000000e-01 : f32
    %228 = arith.mulf %cst_134, %226 : f32
    %229 = arith.addf %227, %228 : f32
    %c0_135 = arith.constant 0 : index
    %c0_136 = arith.constant 0 : index
    %230 = memref.load %arg24[%c0_135, %c0_136] : memref<1x6xf32, #tpu.memory_space<smem>>
    memref.store %229, %arg24[%c0_135, %c0_136] : memref<1x6xf32, #tpu.memory_space<smem>>
    %c0_137 = arith.constant 0 : index
    %c1_138 = arith.constant 1 : index
    %231 = memref.load %arg24[%c0_137, %c1_138] : memref<1x6xf32, #tpu.memory_space<smem>>
    memref.store %23, %arg24[%c0_137, %c1_138] : memref<1x6xf32, #tpu.memory_space<smem>>
    %c0_139 = arith.constant 0 : index
    %c2 = arith.constant 2 : index
    %232 = memref.load %arg24[%c0_139, %c2] : memref<1x6xf32, #tpu.memory_space<smem>>
    memref.store %74, %arg24[%c0_139, %c2] : memref<1x6xf32, #tpu.memory_space<smem>>
    %c0_140 = arith.constant 0 : index
    %c3 = arith.constant 3 : index
    %233 = memref.load %arg24[%c0_140, %c3] : memref<1x6xf32, #tpu.memory_space<smem>>
    memref.store %52, %arg24[%c0_140, %c3] : memref<1x6xf32, #tpu.memory_space<smem>>
    %c0_141 = arith.constant 0 : index
    %c4 = arith.constant 4 : index
    %234 = memref.load %arg24[%c0_141, %c4] : memref<1x6xf32, #tpu.memory_space<smem>>
    memref.store %81, %arg24[%c0_141, %c4] : memref<1x6xf32, #tpu.memory_space<smem>>
    %c0_142 = arith.constant 0 : index
    %c5 = arith.constant 5 : index
    %235 = memref.load %arg24[%c0_142, %c5] : memref<1x6xf32, #tpu.memory_space<smem>>
    memref.store %223, %arg24[%c0_142, %c5] : memref<1x6xf32, #tpu.memory_space<smem>>
    return
  }
}

</mosaic_0001>

<llo_original>
// kernel: tpu_custom_call.1
$region0: #{tpu_custom_call.1}
  #allocation0 [shape = 'u32[]', space=smem, size = 0x4, offset = 0x4, fixed_abs, tag = 'smem constant byte address 0x4 - core index']
  #allocation1 [shape = 'u32[144,128]{1,0:T(1,128)}', space=vmem, size = 0x12000, scoped, tag = 'internal scratch']
  %s0 = inlined_call_operand.vmem [shape: s32[2,1], index: 0, kind: input, shape index: {}]
  %s1 = inlined_call_operand.vmem [shape: f32[2,10], index: 1, kind: input, shape index: {}]
  %s2 = inlined_call_operand.vmem [shape: f32[2,10], index: 2, kind: input, shape index: {}]
  %s3 = inlined_call_operand.vmem [shape: f32[2,8], index: 3, kind: input, shape index: {}]
  %s4 = inlined_call_operand.vmem [shape: f32[2,8], index: 4, kind: input, shape index: {}]
  %s5 = inlined_call_operand.vmem [shape: f32[2,8], index: 5, kind: input, shape index: {}]
  %s6 = inlined_call_operand.vmem [shape: f32[2,32,64], index: 6, kind: input, shape index: {}]
  %s7 = inlined_call_operand.vmem [shape: f32[2,16,64], index: 7, kind: input, shape index: {}]
  %s8 = inlined_call_operand.vmem [shape: f32[16,32], index: 8, kind: input, shape index: {}]
  %s9 = inlined_call_operand.vmem [shape: f32[16,1], index: 9, kind: input, shape index: {}]
  %s10 = inlined_call_operand.vmem [shape: f32[2,32,64], index: 10, kind: input, shape index: {}]
  %s11 = inlined_call_operand.vmem [shape: f32[2,24,64], index: 11, kind: input, shape index: {}]
  %s12 = inlined_call_operand.vmem [shape: f32[24,32], index: 12, kind: input, shape index: {}]
  %s13 = inlined_call_operand.vmem [shape: f32[24,1], index: 13, kind: input, shape index: {}]
  %s14 = inlined_call_operand.vmem [shape: f32[2,64,16], index: 14, kind: input, shape index: {}]
  %s15 = inlined_call_operand.vmem [shape: f32[2,40,16], index: 15, kind: input, shape index: {}]
  %s16 = inlined_call_operand.vmem [shape: f32[40,64], index: 16, kind: input, shape index: {}]
  %s17 = inlined_call_operand.vmem [shape: f32[40,1], index: 17, kind: input, shape index: {}]
  %s18 = inlined_call_operand.vmem [shape: f32[2,96,16], index: 18, kind: input, shape index: {}]
  %s19 = inlined_call_operand.vmem [shape: f32[2,112,16], index: 19, kind: input, shape index: {}]
  %s20 = inlined_call_operand.vmem [shape: f32[112,96], index: 20, kind: input, shape index: {}]
  %s21 = inlined_call_operand.vmem [shape: f32[112,1], index: 21, kind: input, shape index: {}]
  %s22 = inlined_call_operand.vmem [shape: f32[2,64,16], index: 22, kind: input, shape index: {}]
  %s23 = inlined_call_operand.vmem [shape: f32[2,64,16], index: 23, kind: input, shape index: {}]
  %s24 = inlined_call_operand.hbm [shape: f32[1,6], index: 24, kind: output, shape index: {}]
  %s25 = sld [smem:[#allocation0]]
  $region106: #{tpu_custom_call.1} parent=0
    _
  %s27 = ssub.s32 1, %s25
  %s28 = scalar_select 0, %s27, %s25
  $region1: #{tpu_custom_call.1} parent=0
    #allocation2 [shape = 'u8[512]{0}', space=smem, size = 0x200, scoped, tag = 'output window, operand 0, single buffered']
    #allocation3 [shape = 's32[1]{0}', space=sflag, size = 0x4, scoped, tag = 'scoped memory for tpu_custom_call.1']
    %29 = vsyncpa [#allocation3], 0
    // Predicated region
    $region2: #{tpu_custom_call.1} parent=1 // pred_check
      _
    $region3: #{tpu_custom_call.1} parent=1 // pred_check_branch
      %31 = sbr.rel (0) target = $region5
    $region4: #{tpu_custom_call.1} parent=1 // pred_region
      _
    $region5: #{tpu_custom_call.1} parent=1 // pred_fallthru
      _
    // Predicated region
    $region6: #{tpu_custom_call.1} parent=1 // pred_check
      _
    $region7: #{tpu_custom_call.1} parent=1 // pred_check_branch
      %33 = sbr.rel (0) target = $region9
    $region8: #{tpu_custom_call.1} parent=1 // pred_region
      _
    $region9: #{tpu_custom_call.1} parent=1 // pred_fallthru
      _
    // Predicated region
    $region10: #{tpu_custom_call.1} parent=1 // pred_check
      _
    $region11: #{tpu_custom_call.1} parent=1 // pred_check_branch
      %35 = sbr.rel (0) target = $region13
    $region12: #{tpu_custom_call.1} parent=1 // pred_region
      _
    $region13: #{tpu_custom_call.1} parent=1 // pred_fallthru
      _
    // Predicated region
    $region14: #{tpu_custom_call.1} parent=1 // pred_check
      _
    $region15: #{tpu_custom_call.1} parent=1 // pred_check_branch
      %37 = sbr.rel (0) target = $region17
    $region16: #{tpu_custom_call.1} parent=1 // pred_region
      _
    $region17: #{tpu_custom_call.1} parent=1 // pred_fallthru
      _
    // Predicated region
    $region18: #{tpu_custom_call.1} parent=1 // pred_check
      _
    $region19: #{tpu_custom_call.1} parent=1 // pred_check_branch
      %39 = sbr.rel (0) target = $region21
    $region20: #{tpu_custom_call.1} parent=1 // pred_region
      _
    $region21: #{tpu_custom_call.1} parent=1 // pred_fallthru
      _
    // Predicated region
    $region22: #{tpu_custom_call.1} parent=1 // pred_check
      _
    $region23: #{tpu_custom_call.1} parent=1 // pred_check_branch
      %41 = sbr.rel (0) target = $region25
    $region24: #{tpu_custom_call.1} parent=1 // pred_region
      _
    $region25: #{tpu_custom_call.1} parent=1 // pred_fallthru
      _
    // Predicated region
    $region26: #{tpu_custom_call.1} parent=1 // pred_check
      _
    $region27: #{tpu_custom_call.1} parent=1 // pred_check_branch
      %43 = sbr.rel (0) target = $region29
    $region28: #{tpu_custom_call.1} parent=1 // pred_region
      _
    $region29: #{tpu_custom_call.1} parent=1 // pred_fallthru
      _
    // Predicated region
    $region30: #{tpu_custom_call.1} parent=1 // pred_check
      _
    $region31: #{tpu_custom_call.1} parent=1 // pred_check_branch
      %45 = sbr.rel (0) target = $region33
    $region32: #{tpu_custom_call.1} parent=1 // pred_region
      _
    $region33: #{tpu_custom_call.1} parent=1 // pred_fallthru
      _
    // Predicated region
    $region34: #{tpu_custom_call.1} parent=1 // pred_check
      _
    $region35: #{tpu_custom_call.1} parent=1 // pred_check_branch
      %47 = sbr.rel (0) target = $region37
    $region36: #{tpu_custom_call.1} parent=1 // pred_region
      _
    $region37: #{tpu_custom_call.1} parent=1 // pred_fallthru
      _
    // Predicated region
    $region38: #{tpu_custom_call.1} parent=1 // pred_check
      _
    $region39: #{tpu_custom_call.1} parent=1 // pred_check_branch
      %49 = sbr.rel (0) target = $region41
    $region40: #{tpu_custom_call.1} parent=1 // pred_region
      _
    $region41: #{tpu_custom_call.1} parent=1 // pred_fallthru
      _
    // Predicated region
    $region42: #{tpu_custom_call.1} parent=1 // pred_check
      _
    $region43: #{tpu_custom_call.1} parent=1 // pred_check_branch
      %51 = sbr.rel (0) target = $region45
    $region44: #{tpu_custom_call.1} parent=1 // pred_region
      _
    $region45: #{tpu_custom_call.1} parent=1 // pred_fallthru
      _
    // Predicated region
    $region46: #{tpu_custom_call.1} parent=1 // pred_check
      _
    $region47: #{tpu_custom_call.1} parent=1 // pred_check_branch
      %53 = sbr.rel (0) target = $region49
    $region48: #{tpu_custom_call.1} parent=1 // pred_region
      _
    $region49: #{tpu_custom_call.1} parent=1 // pred_fallthru
      _
    // Predicated region
    $region50: #{tpu_custom_call.1} parent=1 // pred_check
      _
    $region51: #{tpu_custom_call.1} parent=1 // pred_check_branch
      %55 = sbr.rel (0) target = $region53
    $region52: #{tpu_custom_call.1} parent=1 // pred_region
      _
    $region53: #{tpu_custom_call.1} parent=1 // pred_fallthru
      _
    // Predicated region
    $region54: #{tpu_custom_call.1} parent=1 // pred_check
      _
    $region55: #{tpu_custom_call.1} parent=1 // pred_check_branch
      %57 = sbr.rel (0) target = $region57
    $region56: #{tpu_custom_call.1} parent=1 // pred_region
      _
    $region57: #{tpu_custom_call.1} parent=1 // pred_fallthru
      _
    // Predicated region
    $region58: #{tpu_custom_call.1} parent=1 // pred_check
      _
    $region59: #{tpu_custom_call.1} parent=1 // pred_check_branch
      %59 = sbr.rel (0) target = $region61
    $region60: #{tpu_custom_call.1} parent=1 // pred_region
      _
    $region61: #{tpu_custom_call.1} parent=1 // pred_fallthru
      _
    // Predicated region
    $region62: #{tpu_custom_call.1} parent=1 // pred_check
      _
    $region63: #{tpu_custom_call.1} parent=1 // pred_check_branch
      %61 = sbr.rel (0) target = $region65
    $region64: #{tpu_custom_call.1} parent=1 // pred_region
      _
    $region65: #{tpu_custom_call.1} parent=1 // pred_fallthru
      _
    // Predicated region
    $region66: #{tpu_custom_call.1} parent=1 // pred_check
      _
    $region67: #{tpu_custom_call.1} parent=1 // pred_check_branch
      %63 = sbr.rel (0) target = $region69
    $region68: #{tpu_custom_call.1} parent=1 // pred_region
      _
    $region69: #{tpu_custom_call.1} parent=1 // pred_fallthru
      _
    // Predicated region
    $region70: #{tpu_custom_call.1} parent=1 // pred_check
      _
    $region71: #{tpu_custom_call.1} parent=1 // pred_check_branch
      %65 = sbr.rel (0) target = $region73
    $region72: #{tpu_custom_call.1} parent=1 // pred_region
      _
    $region73: #{tpu_custom_call.1} parent=1 // pred_fallthru
      _
    // Predicated region
    $region74: #{tpu_custom_call.1} parent=1 // pred_check
      _
    $region75: #{tpu_custom_call.1} parent=1 // pred_check_branch
      %67 = sbr.rel (0) target = $region77
    $region76: #{tpu_custom_call.1} parent=1 // pred_region
      _
    $region77: #{tpu_custom_call.1} parent=1 // pred_fallthru
      _
    // Predicated region
    $region78: #{tpu_custom_call.1} parent=1 // pred_check
      _
    $region79: #{tpu_custom_call.1} parent=1 // pred_check_branch
      %69 = sbr.rel (0) target = $region81
    $region80: #{tpu_custom_call.1} parent=1 // pred_region
      _
    $region81: #{tpu_custom_call.1} parent=1 // pred_fallthru
      _
    // Predicated region
    $region82: #{tpu_custom_call.1} parent=1 // pred_check
      _
    $region83: #{tpu_custom_call.1} parent=1 // pred_check_branch
      %71 = sbr.rel (0) target = $region85
    $region84: #{tpu_custom_call.1} parent=1 // pred_region
      _
    $region85: #{tpu_custom_call.1} parent=1 // pred_fallthru
      _
    // Predicated region
    $region86: #{tpu_custom_call.1} parent=1 // pred_check
      _
    $region87: #{tpu_custom_call.1} parent=1 // pred_check_branch
      %73 = sbr.rel (0) target = $region89
    $region88: #{tpu_custom_call.1} parent=1 // pred_region
      _
    $region89: #{tpu_custom_call.1} parent=1 // pred_fallthru
      _
    // Predicated region
    $region90: #{tpu_custom_call.1} parent=1 // pred_check
      _
    $region91: #{tpu_custom_call.1} parent=1 // pred_check_branch
      %75 = sbr.rel (0) target = $region93
    $region92: #{tpu_custom_call.1} parent=1 // pred_region
      _
    $region93: #{tpu_custom_call.1} parent=1 // pred_fallthru
      _
    // Predicated region
    $region94: #{tpu_custom_call.1} parent=1 // pred_check
      _
    $region95: #{tpu_custom_call.1} parent=1 // pred_check_branch
      %77 = sbr.rel (0) target = $region97
    $region96: #{tpu_custom_call.1} parent=1 // pred_region
      _
    $region97: #{tpu_custom_call.1} parent=1 // pred_fallthru
      _
    %v78 = vld [vmem:[%s1] sm:$0x3]
    %v79 = vld [vmem:[%s2] sm:$0x3]
    %vm80 = vcmask 74752
    %v81 = vsel %vm80, %v78, -inf
    %82 = vmax.xlane.f32.xlu0 %v81
    %v83 = vpop.xlane.xlu0 %82
    %v84 = vsub.f32 %v78, %v83
    %v85 = vmul.f32 %v84, 1.442695
    %v86 = vpow.pop %v85
    %v87 = vsel %vm80, %v86, 0.0
    %88 = vadd.xlane.f32.xlu0 %v87
    %v89 = vpop.xlane.xlu0 %88
    %v90 = vlog2.pop %v89
    %v91 = vmul.f32 %v90, 0.6931472
    %v92 = vsub.f32 %v84, %v91
    %v93 = vlaneseq
    %v94 = vand.u32 %v93, 127
    %v95 = vld [vmem:[%s0] sm:$0x3]
    %96 = vset.pattern.permute.xlu0 0
    %97 = vperm.xlu0 %96, %v95
    %v98 = vpop.permute.xlu0 %97
    %vm99 = vcmp.eq.s32.totalorder %v94, %v98
    %v100 = vsel %vm99, %v92, 0.0
    %v101 = vsel %vm80, %v100, 0.0
    %102 = vadd.xlane.f32.xlu0 %v101
    %v103 = vpop.xlane.xlu0 %102
    %v104 = vrot.slane %v103, 4
    %v105 = vadd.f32 %v103, %v104
    %v106 = vrot.slane %v105, 2
    %v107 = vadd.f32 %v105, %v106
    %v108 = vrot.slane %v107, 1
    %v109 = vadd.f32 %v107, %v108
    %s110 = vtos %v109
    %s111 = ssub.f32 0.0, %s110
    %v112 = vrcp.pop 2.0
    %s113 = vtos %v112
    %s114 = smul.f32 %s111, %s113
    %v115 = vrcp.pop 4.0
    %v116 = vmul.f32 %v84, %v115
    %v117 = vmul.f32 %v116, 1.442695
    %v118 = vpow.pop %v117
    %v119 = vsel %vm80, %v118, 0.0
    %120 = vadd.xlane.f32.xlu0 %v119
    %v121 = vpop.xlane.xlu0 %120
    %v122 = vlog2.pop %v121
    %v123 = vmul.f32 %v122, 0.6931472
    %v124 = vsub.f32 %v116, %v123
    %v125 = vsel %vm80, %v79, -inf
    %126 = vmax.xlane.f32.xlu0 %v125
    %v127 = vpop.xlane.xlu0 %126
    %v128 = vsub.f32 %v79, %v127
    %v129 = vmul.f32 %v128, %v115
    %v130 = vmul.f32 %v129, 1.442695
    %v131 = vpow.pop %v130
    %v132 = vsel %vm80, %v131, 0.0
    %133 = vadd.xlane.f32.xlu0 %v132
    %v134 = vpop.xlane.xlu0 %133
    %v135 = vlog2.pop %v134
    %v136 = vmul.f32 %v135, 0.6931472
    %v137 = vsub.f32 %v129, %v136
    %v138 = vmul.f32 %v137, 1.442695
    %v139 = vpow.pop %v138
    %v140 = vsub.f32 %v137, %v124
    %v141 = vmul.f32 %v139, %v140
    %v142 = vsel %vm80, %v141, 0.0
    %143 = vadd.xlane.f32.xlu0 %v142
    %v144 = vpop.xlane.xlu0 %143
    %v145 = vrot.slane %v144, 4
    %v146 = vadd.f32 %v144, %v145
    %v147 = vrot.slane %v146, 2
    %v148 = vadd.f32 %v146, %v147
    %v149 = vrot.slane %v148, 1
    %v150 = vadd.f32 %v148, %v149
    %s151 = vtos %v150
    %v152 = vrcp.pop 2.0
    %s153 = vtos %v152
    %s154 = smul.f32 %s151, %s153
    %s155 = smul.f32 %s154, 16.0
    %v156 = vld [vmem:[%s3] sm:$0x3]
    %v157 = vld [vmem:[%s4] sm:$0x3]
    %v158 = vld [vmem:[%s5] sm:$0x3]
    %v159 = vlog2.pop %v156
    %v160 = vmul.f32 %v159, 0.6931472
    %v161 = vmax.f32 %v160, -100.0
    %v162 = vsub.f32 1.0, %v156
    %v163 = vlog2.pop %v162
    %v164 = vmul.f32 %v163, 0.6931472
    %v165 = vmax.f32 %v164, -100.0
    %v166 = vmul.f32 %v158, %v161
    %v167 = vsub.f32 1.0, %v158
    %v168 = vmul.f32 %v167, %v165
    %v169 = vadd.f32 %v166, %v168
    %vm170 = vcmask 58368
    %v171 = vsel %vm170, %v169, 0.0
    %172 = vadd.xlane.f32.xlu0 %v171
    %v173 = vpop.xlane.xlu0 %172
    %v174 = vrot.slane %v173, 4
    %v175 = vadd.f32 %v173, %v174
    %v176 = vrot.slane %v175, 2
    %v177 = vadd.f32 %v175, %v176
    %v178 = vrot.slane %v177, 1
    %v179 = vadd.f32 %v177, %v178
    %s180 = vtos %v179
    %s181 = ssub.f32 0.0, %s180
    %v182 = vrcp.pop 16.0
    %s183 = vtos %v182
    %s184 = smul.f32 %s181, %s183
    %v185 = vsub.f32 %v156, %v157
    %v186 = vmul.f32 %v185, %v185
    %v187 = vsel %vm170, %v186, 0.0
    %188 = vadd.xlane.f32.xlu0 %v187
    %v189 = vpop.xlane.xlu0 %188
    %v190 = vrot.slane %v189, 4
    %v191 = vadd.f32 %v189, %v190
    %v192 = vrot.slane %v191, 2
    %v193 = vadd.f32 %v191, %v192
    %v194 = vrot.slane %v193, 1
    %v195 = vadd.f32 %v193, %v194
    %s196 = vtos %v195
    %v197 = vrcp.pop 16.0
    %s198 = vtos %v197
    %s199 = smul.f32 %s196, %s198
    %v200 = vld [vmem:[%s8] sm:$0xff]
    %v201 = vld [vmem:[%s8 + $0x8] sm:$0xff]
    %v202 = vld [vmem:[%s9] sm:$0xff]
    %v203 = vld [vmem:[%s9 + $0x8] sm:$0xff]
    %v204 = vld [vmem:[%s6] sm:$0xff]
    %v205 = vld [vmem:[%s6 + $0x8] sm:$0xff]
    %v206 = vld [vmem:[%s6 + $0x10] sm:$0xff]
    %v207 = vld [vmem:[%s6 + $0x18] sm:$0xff]
    %v208 = vld [vmem:[%s7] sm:$0xff]
    %v209 = vld [vmem:[%s7 + $0x8] sm:$0xff]
    %211 = vset.pattern.permute.xlu0 0
    %212 = vperm.xlu0 %211, %v202
    %v213 = vpop.permute.xlu0 %212
    %216 = vset.pattern.permute.xlu0 0
    %217 = vperm.xlu0 %216, %v203
    %v218 = vpop.permute.xlu0 %217
    %vm220 = vcmask 261120
    %v222 = vsel %vm220, %v200, 0
    %v225 = vsel %vm220, %v201, 0
    %227 = vmatprep.subr.mxu0 0.0
    %228 = vmatpush1.msra.mxu0 %v204
    %229 = vmatprep.subr.mxu0 0.0
    %230 = vmatpush1.msra.mxu0 %v205
    %231 = vmatprep.subr.mxu0 0.0
    %232 = vmatpush1.msra.mxu0 %v206
    %233 = vmatprep.subr.mxu0 0.0
    %234 = vmatpush1.msra.mxu0 %v207
    %235 = vmatprep.subr.mxu0 0.0
    %236 = vmatpush1.msra.mxu0 0.0
    %237 = vmatprep.subr.mxu0 0.0
    %238 = vmatpush1.msra.mxu0 0.0
    %239 = vmatprep.subr.mxu0 0.0
    %240 = vmatpush1.msra.mxu0 0.0
    %241 = vmatprep.subr.mxu0 0.0
    %242 = vmatpush1.msra.mxu0 0.0
    %243 = vmatprep.subr.mxu0 0.0
    %244 = vmatpush1.msra.mxu0 0.0
    %245 = vmatprep.subr.mxu0 0.0
    %246 = vmatpush1.msra.mxu0 0.0
    %247 = vmatprep.subr.mxu0 0.0
    %248 = vmatpush1.msra.mxu0 0.0
    %249 = vmatprep.subr.mxu0 0.0
    %250 = vmatpush1.msra.mxu0 0.0
    %251 = vmatprep.subr.mxu0 0.0
    %252 = vmatpush1.msra.mxu0 0.0
    %253 = vmatprep.subr.mxu0 0.0
    %254 = vmatpush1.msra.mxu0 0.0
    %255 = vmatprep.subr.mxu0 0.0
    %256 = vmatpush1.msra.mxu0 0.0
    %257 = vmatprep.subr.mxu0 0.0
    %258 = vmatpush1.msra.mxu0 0.0
    %259 = vmatprep.subr.mxu0 0.0
    %260 = vmatpush1.msra.mxu0 0.0
    %261 = vmatprep.subr.mxu0 0.0
    %262 = vmatpush1.msra.mxu0 0.0
    %263 = vmatprep.subr.mxu0 0.0
    %264 = vmatpush1.msra.mxu0 0.0
    %265 = vmatprep.subr.mxu0 0.0
    %266 = vmatpush1.msra.mxu0 0.0
    %267 = vmatprep.subr.mxu0 0.0
    %268 = vmatpush1.msra.mxu0 0.0
    %269 = vmatprep.subr.mxu0 0.0
    %270 = vmatpush1.msra.mxu0 0.0
    %271 = vmatprep.subr.mxu0 0.0
    %272 = vmatpush1.msra.mxu0 0.0
    %273 = vmatprep.subr.mxu0 0.0
    %274 = vmatpush1.msra.mxu0 0.0
    %275 = vmatprep.subr.mxu0 0.0
    %276 = vmatpush1.msra.mxu0 0.0
    %277 = vmatprep.subr.mxu0 0.0
    %278 = vmatpush1.msra.mxu0 0.0
    %279 = vmatprep.subr.mxu0 0.0
    %280 = vmatpush1.msra.mxu0 0.0
    %281 = vmatprep.subr.mxu0 0.0
    %282 = vmatpush1.msra.mxu0 0.0
    %283 = vmatprep.subr.mxu0 0.0
    %284 = vmatpush1.msra.mxu0 0.0
    %285 = vmatprep.subr.mxu0 0.0
    %286 = vmatpush1.msra.mxu0 0.0
    %287 = vmatprep.subr.mxu0 0.0
    %288 = vmatpush1.msra.mxu0 0.0
    %289 = vmatprep.subr.mxu0 0.0
    %290 = vmatpush1.msra.mxu0 0.0
    %291 = vmatprep.mubr.f32.mxu0 0.0
    %292 = vmatmul.mubr.f32.gmra.mrb[0].mxu0 %v222
    %v293 = vpop.f32.mrb[0].mxu0
    %v294 = vadd.f32 %v213, %v293
    %v295 = vpop.f32.mrb[0].mxu0
    %296 = vmatprep.mubr.f32.mxu0 0.0
    %297 = vmatmul.mubr.f32.gmra.mrb[0].mxu0 %v225
    %v298 = vpop.f32.mrb[0].mxu0
    %v299 = vadd.f32 %v218, %v298
    %v300 = vpop.f32.mrb[0].mxu0
    %301 = vdwg.mxu0
    %v302 = vsub.f32 %v294, %v208
    %v303 = vsub.f32 %v299, %v209
    %v304 = vmul.f32 %v302, %v302
    %v305 = vmul.f32 %v303, %v303
    %vm306 = vcmask 523264
    %v307 = vsel %vm306, %v304, 0.0
    %v308 = vsel %vm306, %v305, 0.0
    %v309 = vadd.f32 %v307, %v308
    %310 = vadd.xlane.f32.xlu0 %v309
    %v311 = vpop.xlane.xlu0 %310
    %v312 = vrot.slane %v311, 4
    %v313 = vadd.f32 %v311, %v312
    %v314 = vrot.slane %v313, 2
    %v315 = vadd.f32 %v313, %v314
    %v316 = vrot.slane %v315, 1
    %v317 = vadd.f32 %v315, %v316
    %s318 = vtos %v317
    %s319 = sadd.f32 %s318, 0.0
    %s320 = scalar_lea.vmem %s6, 32
    %v321 = vld [vmem:[%s320] sm:$0xff]
    %v322 = vld [vmem:[%s320 + $0x8] sm:$0xff]
    %v323 = vld [vmem:[%s320 + $0x10] sm:$0xff]
    %v324 = vld [vmem:[%s320 + $0x18] sm:$0xff]
    %s325 = scalar_lea.vmem %s7, 16
    %v326 = vld [vmem:[%s325] sm:$0xff]
    %v327 = vld [vmem:[%s325 + $0x8] sm:$0xff]
    %328 = vmatprep.subr.mxu0 0.0
    %329 = vmatpush1.msra.mxu0 %v321
    %330 = vmatprep.subr.mxu0 0.0
    %331 = vmatpush1.msra.mxu0 %v322
    %332 = vmatprep.subr.mxu0 0.0
    %333 = vmatpush1.msra.mxu0 %v323
    %334 = vmatprep.subr.mxu0 0.0
    %335 = vmatpush1.msra.mxu0 %v324
    %336 = vmatprep.subr.mxu0 0.0
    %337 = vmatpush1.msra.mxu0 0.0
    %338 = vmatprep.subr.mxu0 0.0
    %339 = vmatpush1.msra.mxu0 0.0
    %340 = vmatprep.subr.mxu0 0.0
    %341 = vmatpush1.msra.mxu0 0.0
    %342 = vmatprep.subr.mxu0 0.0
    %343 = vmatpush1.msra.mxu0 0.0
    %344 = vmatprep.subr.mxu0 0.0
    %345 = vmatpush1.msra.mxu0 0.0
    %346 = vmatprep.subr.mxu0 0.0
    %347 = vmatpush1.msra.mxu0 0.0
    %348 = vmatprep.subr.mxu0 0.0
    %349 = vmatpush1.msra.mxu0 0.0
    %350 = vmatprep.subr.mxu0 0.0
    %351 = vmatpush1.msra.mxu0 0.0
    %352 = vmatprep.subr.mxu0 0.0
    %353 = vmatpush1.msra.mxu0 0.0
    %354 = vmatprep.subr.mxu0 0.0
    %355 = vmatpush1.msra.mxu0 0.0
    %356 = vmatprep.subr.mxu0 0.0
    %357 = vmatpush1.msra.mxu0 0.0
    %358 = vmatprep.subr.mxu0 0.0
    %359 = vmatpush1.msra.mxu0 0.0
    %360 = vmatprep.subr.mxu0 0.0
    %361 = vmatpush1.msra.mxu0 0.0
    %362 = vmatprep.subr.mxu0 0.0
    %363 = vmatpush1.msra.mxu0 0.0
    %364 = vmatprep.subr.mxu0 0.0
    %365 = vmatpush1.msra.mxu0 0.0
    %366 = vmatprep.subr.mxu0 0.0
    %367 = vmatpush1.msra.mxu0 0.0
    %368 = vmatprep.subr.mxu0 0.0
    %369 = vmatpush1.msra.mxu0 0.0
    %370 = vmatprep.subr.mxu0 0.0
    %371 = vmatpush1.msra.mxu0 0.0
    %372 = vmatprep.subr.mxu0 0.0
    %373 = vmatpush1.msra.mxu0 0.0
    %374 = vmatprep.subr.mxu0 0.0
    %375 = vmatpush1.msra.mxu0 0.0
    %376 = vmatprep.subr.mxu0 0.0
    %377 = vmatpush1.msra.mxu0 0.0
    %378 = vmatprep.subr.mxu0 0.0
    %379 = vmatpush1.msra.mxu0 0.0
    %380 = vmatprep.subr.mxu0 0.0
    %381 = vmatpush1.msra.mxu0 0.0
    %382 = vmatprep.subr.mxu0 0.0
    %383 = vmatpush1.msra.mxu0 0.0
    %384 = vmatprep.subr.mxu0 0.0
    %385 = vmatpush1.msra.mxu0 0.0
    %386 = vmatprep.subr.mxu0 0.0
    %387 = vmatpush1.msra.mxu0 0.0
    %388 = vmatprep.subr.mxu0 0.0
    %389 = vmatpush1.msra.mxu0 0.0
    %390 = vmatprep.subr.mxu0 0.0
    %391 = vmatpush1.msra.mxu0 0.0
    %392 = vmatprep.mubr.f32.mxu0 0.0
    %393 = vmatmul.mubr.f32.gmra.mrb[0].mxu0 %v222
    %v394 = vpop.f32.mrb[0].mxu0
    %v395 = vadd.f32 %v213, %v394
    %v396 = vpop.f32.mrb[0].mxu0
    %397 = vmatprep.mubr.f32.mxu0 0.0
    %398 = vmatmul.mubr.f32.gmra.mrb[0].mxu0 %v225
    %v399 = vpop.f32.mrb[0].mxu0
    %v400 = vadd.f32 %v218, %v399
    %v401 = vpop.f32.mrb[0].mxu0
    %402 = vdwg.mxu0
    %v403 = vsub.f32 %v395, %v326
    %v404 = vsub.f32 %v400, %v327
    %v405 = vmul.f32 %v403, %v403
    %v406 = vmul.f32 %v404, %v404
    %v407 = vsel %vm306, %v405, 0.0
    %v408 = vsel %vm306, %v406, 0.0
    %v409 = vadd.f32 %v407, %v408
    %410 = vadd.xlane.f32.xlu0 %v409
    %v411 = vpop.xlane.xlu0 %410
    %v412 = vrot.slane %v411, 4
    %v413 = vadd.f32 %v411, %v412
    %v414 = vrot.slane %v413, 2
    %v415 = vadd.f32 %v413, %v414
    %v416 = vrot.slane %v415, 1
    %v417 = vadd.f32 %v415, %v416
    %s418 = vtos %v417
    %s419 = sadd.f32 %s319, %s418
    %v420 = vrcp.pop 2048.0
    %s421 = vtos %v420
    %s422 = smul.f32 %s419, %s421
    %v423 = vld [vmem:[%s12] sm:$0xff]
    %v424 = vld [vmem:[%s12 + $0x8] sm:$0xff]
    %v425 = vld [vmem:[%s12 + $0x10] sm:$0xff]
    %v426 = vld [vmem:[%s13] sm:$0xff]
    %v427 = vld [vmem:[%s13 + $0x8] sm:$0xff]
    %v428 = vld [vmem:[%s13 + $0x10] sm:$0xff]
    %v429 = vld [vmem:[%s10] sm:$0xff]
    %v430 = vld [vmem:[%s10 + $0x8] sm:$0xff]
    %v431 = vld [vmem:[%s10 + $0x10] sm:$0xff]
    %v432 = vld [vmem:[%s10 + $0x18] sm:$0xff]
    %v433 = vld [vmem:[%s11] sm:$0xff]
    %v434 = vld [vmem:[%s11 + $0x8] sm:$0xff]
    %v435 = vld [vmem:[%s11 + $0x10] sm:$0xff]
    %437 = vset.pattern.permute.xlu0 0
    %438 = vperm.xlu0 %437, %v426
    %v439 = vpop.permute.xlu0 %438
    %442 = vset.pattern.permute.xlu0 0
    %443 = vperm.xlu0 %442, %v427
    %v444 = vpop.permute.xlu0 %443
    %447 = vset.pattern.permute.xlu0 0
    %448 = vperm.xlu0 %447, %v428
    %v449 = vpop.permute.xlu0 %448
    %v452 = vsel %vm220, %v423, 0
    %v455 = vsel %vm220, %v424, 0
    %v458 = vsel %vm220, %v425, 0
    %460 = vmatprep.subr.mxu0 0.0
    %461 = vmatpush1.msra.mxu0 %v429
    %462 = vmatprep.subr.mxu0 0.0
    %463 = vmatpush1.msra.mxu0 %v430
    %464 = vmatprep.subr.mxu0 0.0
    %465 = vmatpush1.msra.mxu0 %v431
    %466 = vmatprep.subr.mxu0 0.0
    %467 = vmatpush1.msra.mxu0 %v432
    %468 = vmatprep.subr.mxu0 0.0
    %469 = vmatpush1.msra.mxu0 0.0
    %470 = vmatprep.subr.mxu0 0.0
    %471 = vmatpush1.msra.mxu0 0.0
    %472 = vmatprep.subr.mxu0 0.0
    %473 = vmatpush1.msra.mxu0 0.0
    %474 = vmatprep.subr.mxu0 0.0
    %475 = vmatpush1.msra.mxu0 0.0
    %476 = vmatprep.subr.mxu0 0.0
    %477 = vmatpush1.msra.mxu0 0.0
    %478 = vmatprep.subr.mxu0 0.0
    %479 = vmatpush1.msra.mxu0 0.0
    %480 = vmatprep.subr.mxu0 0.0
    %481 = vmatpush1.msra.mxu0 0.0
    %482 = vmatprep.subr.mxu0 0.0
    %483 = vmatpush1.msra.mxu0 0.0
    %484 = vmatprep.subr.mxu0 0.0
    %485 = vmatpush1.msra.mxu0 0.0
    %486 = vmatprep.subr.mxu0 0.0
    %487 = vmatpush1.msra.mxu0 0.0
    %488 = vmatprep.subr.mxu0 0.0
    %489 = vmatpush1.msra.mxu0 0.0
    %490 = vmatprep.subr.mxu0 0.0
    %491 = vmatpush1.msra.mxu0 0.0
    %492 = vmatprep.subr.mxu0 0.0
    %493 = vmatpush1.msra.mxu0 0.0
    %494 = vmatprep.subr.mxu0 0.0
    %495 = vmatpush1.msra.mxu0 0.0
    %496 = vmatprep.subr.mxu0 0.0
    %497 = vmatpush1.msra.mxu0 0.0
    %498 = vmatprep.subr.mxu0 0.0
    %499 = vmatpush1.msra.mxu0 0.0
    %500 = vmatprep.subr.mxu0 0.0
    %501 = vmatpush1.msra.mxu0 0.0
    %502 = vmatprep.subr.mxu0 0.0
    %503 = vmatpush1.msra.mxu0 0.0
    %504 = vmatprep.subr.mxu0 0.0
    %505 = vmatpush1.msra.mxu0 0.0
    %506 = vmatprep.subr.mxu0 0.0
    %507 = vmatpush1.msra.mxu0 0.0
    %508 = vmatprep.subr.mxu0 0.0
    %509 = vmatpush1.msra.mxu0 0.0
    %510 = vmatprep.subr.mxu0 0.0
    %511 = vmatpush1.msra.mxu0 0.0
    %512 = vmatprep.subr.mxu0 0.0
    %513 = vmatpush1.msra.mxu0 0.0
    %514 = vmatprep.subr.mxu0 0.0
    %515 = vmatpush1.msra.mxu0 0.0
    %516 = vmatprep.subr.mxu0 0.0
    %517 = vmatpush1.msra.mxu0 0.0
    %518 = vmatprep.subr.mxu0 0.0
    %519 = vmatpush1.msra.mxu0 0.0
    %520 = vmatprep.subr.mxu0 0.0
    %521 = vmatpush1.msra.mxu0 0.0
    %522 = vmatprep.subr.mxu0 0.0
    %523 = vmatpush1.msra.mxu0 0.0
    %524 = vmatprep.mubr.f32.mxu0 0.0
    %525 = vmatmul.mubr.f32.gmra.mrb[0].mxu0 %v452
    %v526 = vpop.f32.mrb[0].mxu0
    %v527 = vadd.f32 %v439, %v526
    %v528 = vpop.f32.mrb[0].mxu0
    %529 = vmatprep.mubr.f32.mxu0 0.0
    %530 = vmatmul.mubr.f32.gmra.mrb[0].mxu0 %v455
    %v531 = vpop.f32.mrb[0].mxu0
    %v532 = vadd.f32 %v444, %v531
    %v533 = vpop.f32.mrb[0].mxu0
    %534 = vmatprep.mubr.f32.mxu0 0.0
    %535 = vmatmul.mubr.f32.gmra.mrb[0].mxu0 %v458
    %v536 = vpop.f32.mrb[0].mxu0
    %v537 = vadd.f32 %v449, %v536
    %v538 = vpop.f32.mrb[0].mxu0
    %539 = vdwg.mxu0
    %v540 = vsub.f32 %v527, %v433
    %v541 = vsub.f32 %v532, %v434
    %v542 = vsub.f32 %v537, %v435
    %v543 = vmul.f32 %v540, %v540
    %v544 = vmul.f32 %v541, %v541
    %v545 = vmul.f32 %v542, %v542
    %v546 = vsel %vm306, %v543, 0.0
    %v547 = vsel %vm306, %v544, 0.0
    %v548 = vadd.f32 %v546, %v547
    %v549 = vsel %vm306, %v545, 0.0
    %v550 = vadd.f32 %v548, %v549
    %551 = vadd.xlane.f32.xlu0 %v550
    %v552 = vpop.xlane.xlu0 %551
    %v553 = vrot.slane %v552, 4
    %v554 = vadd.f32 %v552, %v553
    %v555 = vrot.slane %v554, 2
    %v556 = vadd.f32 %v554, %v555
    %v557 = vrot.slane %v556, 1
    %v558 = vadd.f32 %v556, %v557
    %s559 = vtos %v558
    %s560 = sadd.f32 %s559, 0.0
    %s561 = scalar_lea.vmem %s10, 32
    %v562 = vld [vmem:[%s561] sm:$0xff]
    %v563 = vld [vmem:[%s561 + $0x8] sm:$0xff]
    %v564 = vld [vmem:[%s561 + $0x10] sm:$0xff]
    %v565 = vld [vmem:[%s561 + $0x18] sm:$0xff]
    %s566 = scalar_lea.vmem %s11, 24
    %v567 = vld [vmem:[%s566] sm:$0xff]
    %v568 = vld [vmem:[%s566 + $0x8] sm:$0xff]
    %v569 = vld [vmem:[%s566 + $0x10] sm:$0xff]
    %570 = vmatprep.subr.mxu0 0.0
    %571 = vmatpush1.msra.mxu0 %v562
    %572 = vmatprep.subr.mxu0 0.0
    %573 = vmatpush1.msra.mxu0 %v563
    %574 = vmatprep.subr.mxu0 0.0
    %575 = vmatpush1.msra.mxu0 %v564
    %576 = vmatprep.subr.mxu0 0.0
    %577 = vmatpush1.msra.mxu0 %v565
    %578 = vmatprep.subr.mxu0 0.0
    %579 = vmatpush1.msra.mxu0 0.0
    %580 = vmatprep.subr.mxu0 0.0
    %581 = vmatpush1.msra.mxu0 0.0
    %582 = vmatprep.subr.mxu0 0.0
    %583 = vmatpush1.msra.mxu0 0.0
    %584 = vmatprep.subr.mxu0 0.0
    %585 = vmatpush1.msra.mxu0 0.0
    %586 = vmatprep.subr.mxu0 0.0
    %587 = vmatpush1.msra.mxu0 0.0
    %588 = vmatprep.subr.mxu0 0.0
    %589 = vmatpush1.msra.mxu0 0.0
    %590 = vmatprep.subr.mxu0 0.0
    %591 = vmatpush1.msra.mxu0 0.0
    %592 = vmatprep.subr.mxu0 0.0
    %593 = vmatpush1.msra.mxu0 0.0
    %594 = vmatprep.subr.mxu0 0.0
    %595 = vmatpush1.msra.mxu0 0.0
    %596 = vmatprep.subr.mxu0 0.0
    %597 = vmatpush1.msra.mxu0 0.0
    %598 = vmatprep.subr.mxu0 0.0
    %599 = vmatpush1.msra.mxu0 0.0
    %600 = vmatprep.subr.mxu0 0.0
    %601 = vmatpush1.msra.mxu0 0.0
    %602 = vmatprep.subr.mxu0 0.0
    %603 = vmatpush1.msra.mxu0 0.0
    %604 = vmatprep.subr.mxu0 0.0
    %605 = vmatpush1.msra.mxu0 0.0
    %606 = vmatprep.subr.mxu0 0.0
    %607 = vmatpush1.msra.mxu0 0.0
    %608 = vmatprep.subr.mxu0 0.0
    %609 = vmatpush1.msra.mxu0 0.0
    %610 = vmatprep.subr.mxu0 0.0
    %611 = vmatpush1.msra.mxu0 0.0
    %612 = vmatprep.subr.mxu0 0.0
    %613 = vmatpush1.msra.mxu0 0.0
    %614 = vmatprep.subr.mxu0 0.0
    %615 = vmatpush1.msra.mxu0 0.0
    %616 = vmatprep.subr.mxu0 0.0
    %617 = vmatpush1.msra.mxu0 0.0
    %618 = vmatprep.subr.mxu0 0.0
    %619 = vmatpush1.msra.mxu0 0.0
    %620 = vmatprep.subr.mxu0 0.0
    %621 = vmatpush1.msra.mxu0 0.0
    %622 = vmatprep.subr.mxu0 0.0
    %623 = vmatpush1.msra.mxu0 0.0
    %624 = vmatprep.subr.mxu0 0.0
    %625 = vmatpush1.msra.mxu0 0.0
    %626 = vmatprep.subr.mxu0 0.0
    %627 = vmatpush1.msra.mxu0 0.0
    %628 = vmatprep.subr.mxu0 0.0
    %629 = vmatpush1.msra.mxu0 0.0
    %630 = vmatprep.subr.mxu0 0.0
    %631 = vmatpush1.msra.mxu0 0.0
    %632 = vmatprep.subr.mxu0 0.0
    %633 = vmatpush1.msra.mxu0 0.0
    %634 = vmatprep.mubr.f32.mxu0 0.0
    %635 = vmatmul.mubr.f32.gmra.mrb[0].mxu0 %v452
    %v636 = vpop.f32.mrb[0].mxu0
    %v637 = vadd.f32 %v439, %v636
    %v638 = vpop.f32.mrb[0].mxu0
    %639 = vmatprep.mubr.f32.mxu0 0.0
    %640 = vmatmul.mubr.f32.gmra.mrb[0].mxu0 %v455
    %v641 = vpop.f32.mrb[0].mxu0
    %v642 = vadd.f32 %v444, %v641
    %v643 = vpop.f32.mrb[0].mxu0
    %644 = vmatprep.mubr.f32.mxu0 0.0
    %645 = vmatmul.mubr.f32.gmra.mrb[0].mxu0 %v458
    %v646 = vpop.f32.mrb[0].mxu0
    %v647 = vadd.f32 %v449, %v646
    %v648 = vpop.f32.mrb[0].mxu0
    %649 = vdwg.mxu0
    %v650 = vsub.f32 %v637, %v567
    %v651 = vsub.f32 %v642, %v568
    %v652 = vsub.f32 %v647, %v569
    %v653 = vmul.f32 %v650, %v650
    %v654 = vmul.f32 %v651, %v651
    %v655 = vmul.f32 %v652, %v652
    %v656 = vsel %vm306, %v653, 0.0
    %v657 = vsel %vm306, %v654, 0.0
    %v658 = vadd.f32 %v656, %v657
    %v659 = vsel %vm306, %v655, 0.0
    %v660 = vadd.f32 %v658, %v659
    %661 = vadd.xlane.f32.xlu0 %v660
    %v662 = vpop.xlane.xlu0 %661
    %v663 = vrot.slane %v662, 4
    %v664 = vadd.f32 %v662, %v663
    %v665 = vrot.slane %v664, 2
    %v666 = vadd.f32 %v664, %v665
    %v667 = vrot.slane %v666, 1
    %v668 = vadd.f32 %v666, %v667
    %s669 = vtos %v668
    %s670 = sadd.f32 %s560, %s669
    %v671 = vrcp.pop 3072.0
    %s672 = vtos %v671
    %s673 = smul.f32 %s670, %s672
    %v674 = vld [vmem:[%s16] sm:$0xff]
    %v675 = vld [vmem:[%s16 + $0x8] sm:$0xff]
    %v676 = vld [vmem:[%s16 + $0x10] sm:$0xff]
    %v677 = vld [vmem:[%s16 + $0x18] sm:$0xff]
    %v678 = vld [vmem:[%s16 + $0x20] sm:$0xff]
    %v679 = vld [vmem:[%s17] sm:$0xff]
    %v680 = vld [vmem:[%s17 + $0x8] sm:$0xff]
    %v681 = vld [vmem:[%s17 + $0x10] sm:$0xff]
    %v682 = vld [vmem:[%s17 + $0x18] sm:$0xff]
    %v683 = vld [vmem:[%s17 + $0x20] sm:$0xff]
    %v684 = vld [vmem:[%s14] sm:$0xff]
    %v685 = vld [vmem:[%s14 + $0x8] sm:$0xff]
    %v686 = vld [vmem:[%s14 + $0x10] sm:$0xff]
    %v687 = vld [vmem:[%s14 + $0x18] sm:$0xff]
    %v688 = vld [vmem:[%s14 + $0x20] sm:$0xff]
    %v689 = vld [vmem:[%s14 + $0x28] sm:$0xff]
    %v690 = vld [vmem:[%s14 + $0x30] sm:$0xff]
    %v691 = vld [vmem:[%s14 + $0x38] sm:$0xff]
    %v692 = vld [vmem:[%s15] sm:$0xff]
    %v693 = vld [vmem:[%s15 + $0x8] sm:$0xff]
    %v694 = vld [vmem:[%s15 + $0x10] sm:$0xff]
    %v695 = vld [vmem:[%s15 + $0x18] sm:$0xff]
    %v696 = vld [vmem:[%s15 + $0x20] sm:$0xff]
    %698 = vset.pattern.permute.xlu0 0
    %699 = vperm.xlu0 %698, %v679
    %v700 = vpop.permute.xlu0 %699
    %703 = vset.pattern.permute.xlu0 0
    %704 = vperm.xlu0 %703, %v680
    %v705 = vpop.permute.xlu0 %704
    %708 = vset.pattern.permute.xlu0 0
    %709 = vperm.xlu0 %708, %v681
    %v710 = vpop.permute.xlu0 %709
    %713 = vset.pattern.permute.xlu0 0
    %714 = vperm.xlu0 %713, %v682
    %v715 = vpop.permute.xlu0 %714
    %718 = vset.pattern.permute.xlu0 0
    %719 = vperm.xlu0 %718, %v683
    %v720 = vpop.permute.xlu0 %719
    %v723 = vsel %vm306, %v674, 0
    %v726 = vsel %vm306, %v675, 0
    %v729 = vsel %vm306, %v676, 0
    %v732 = vsel %vm306, %v677, 0
    %v735 = vsel %vm306, %v678, 0
    %737 = vmatprep.subr.mxu0 0.0
    %738 = vmatpush1.msra.mxu0 %v684
    %739 = vmatprep.subr.mxu0 0.0
    %740 = vmatpush1.msra.mxu0 %v685
    %741 = vmatprep.subr.mxu0 0.0
    %742 = vmatpush1.msra.mxu0 %v686
    %743 = vmatprep.subr.mxu0 0.0
    %744 = vmatpush1.msra.mxu0 %v687
    %745 = vmatprep.subr.mxu0 0.0
    %746 = vmatpush1.msra.mxu0 %v688
    %747 = vmatprep.subr.mxu0 0.0
    %748 = vmatpush1.msra.mxu0 %v689
    %749 = vmatprep.subr.mxu0 0.0
    %750 = vmatpush1.msra.mxu0 %v690
    %751 = vmatprep.subr.mxu0 0.0
    %752 = vmatpush1.msra.mxu0 %v691
    %753 = vmatprep.subr.mxu0 0.0
    %754 = vmatpush1.msra.mxu0 0.0
    %755 = vmatprep.subr.mxu0 0.0
    %756 = vmatpush1.msra.mxu0 0.0
    %757 = vmatprep.subr.mxu0 0.0
    %758 = vmatpush1.msra.mxu0 0.0
    %759 = vmatprep.subr.mxu0 0.0
    %760 = vmatpush1.msra.mxu0 0.0
    %761 = vmatprep.subr.mxu0 0.0
    %762 = vmatpush1.msra.mxu0 0.0
    %763 = vmatprep.subr.mxu0 0.0
    %764 = vmatpush1.msra.mxu0 0.0
    %765 = vmatprep.subr.mxu0 0.0
    %766 = vmatpush1.msra.mxu0 0.0
    %767 = vmatprep.subr.mxu0 0.0
    %768 = vmatpush1.msra.mxu0 0.0
    %769 = vmatprep.subr.mxu0 0.0
    %770 = vmatpush1.msra.mxu0 0.0
    %771 = vmatprep.subr.mxu0 0.0
    %772 = vmatpush1.msra.mxu0 0.0
    %773 = vmatprep.subr.mxu0 0.0
    %774 = vmatpush1.msra.mxu0 0.0
    %775 = vmatprep.subr.mxu0 0.0
    %776 = vmatpush1.msra.mxu0 0.0
    %777 = vmatprep.subr.mxu0 0.0
    %778 = vmatpush1.msra.mxu0 0.0
    %779 = vmatprep.subr.mxu0 0.0
    %780 = vmatpush1.msra.mxu0 0.0
    %781 = vmatprep.subr.mxu0 0.0
    %782 = vmatpush1.msra.mxu0 0.0
    %783 = vmatprep.subr.mxu0 0.0
    %784 = vmatpush1.msra.mxu0 0.0
    %785 = vmatprep.subr.mxu0 0.0
    %786 = vmatpush1.msra.mxu0 0.0
    %787 = vmatprep.subr.mxu0 0.0
    %788 = vmatpush1.msra.mxu0 0.0
    %789 = vmatprep.subr.mxu0 0.0
    %790 = vmatpush1.msra.mxu0 0.0
    %791 = vmatprep.subr.mxu0 0.0
    %792 = vmatpush1.msra.mxu0 0.0
    %793 = vmatprep.subr.mxu0 0.0
    %794 = vmatpush1.msra.mxu0 0.0
    %795 = vmatprep.subr.mxu0 0.0
    %796 = vmatpush1.msra.mxu0 0.0
    %797 = vmatprep.subr.mxu0 0.0
    %798 = vmatpush1.msra.mxu0 0.0
    %799 = vmatprep.subr.mxu0 0.0
    %800 = vmatpush1.msra.mxu0 0.0
    %801 = vmatprep.mubr.f32.mxu0 0.0
    %802 = vmatmul.mubr.f32.gmra.mrb[0].mxu0 %v723
    %v803 = vpop.f32.mrb[0].mxu0
    %v804 = vadd.f32 %v700, %v803
    %v805 = vpop.f32.mrb[0].mxu0
    %806 = vmatprep.mubr.f32.mxu0 0.0
    %807 = vmatmul.mubr.f32.gmra.mrb[0].mxu0 %v726
    %v808 = vpop.f32.mrb[0].mxu0
    %v809 = vadd.f32 %v705, %v808
    %v810 = vpop.f32.mrb[0].mxu0
    %811 = vmatprep.mubr.f32.mxu0 0.0
    %812 = vmatmul.mubr.f32.gmra.mrb[0].mxu0 %v729
    %v813 = vpop.f32.mrb[0].mxu0
    %v814 = vadd.f32 %v710, %v813
    %v815 = vpop.f32.mrb[0].mxu0
    %816 = vmatprep.mubr.f32.mxu0 0.0
    %817 = vmatmul.mubr.f32.gmra.mrb[0].mxu0 %v732
    %v818 = vpop.f32.mrb[0].mxu0
    %v819 = vadd.f32 %v715, %v818
    %v820 = vpop.f32.mrb[0].mxu0
    %821 = vmatprep.mubr.f32.mxu0 0.0
    %822 = vmatmul.mubr.f32.gmra.mrb[0].mxu0 %v735
    %v823 = vpop.f32.mrb[0].mxu0
    %v824 = vadd.f32 %v720, %v823
    %v825 = vpop.f32.mrb[0].mxu0
    %826 = vdwg.mxu0
    %v827 = vsub.f32 %v804, %v692
    %v828 = vsub.f32 %v809, %v693
    %v829 = vsub.f32 %v814, %v694
    %v830 = vsub.f32 %v819, %v695
    %v831 = vsub.f32 %v824, %v696
    %v832 = vmul.f32 %v827, %v827
    %v833 = vmul.f32 %v828, %v828
    %v834 = vmul.f32 %v829, %v829
    %v835 = vmul.f32 %v830, %v830
    %v836 = vmul.f32 %v831, %v831
    %vm837 = vcmask 130048
    %v838 = vsel %vm837, %v832, 0.0
    %v839 = vsel %vm837, %v833, 0.0
    %v840 = vadd.f32 %v838, %v839
    %v841 = vsel %vm837, %v834, 0.0
    %v842 = vadd.f32 %v840, %v841
    %v843 = vsel %vm837, %v835, 0.0
    %v844 = vadd.f32 %v842, %v843
    %v845 = vsel %vm837, %v836, 0.0
    %v846 = vadd.f32 %v844, %v845
    %847 = vadd.xlane.f32.xlu0 %v846
    %v848 = vpop.xlane.xlu0 %847
    %v849 = vrot.slane %v848, 4
    %v850 = vadd.f32 %v848, %v849
    %v851 = vrot.slane %v850, 2
    %v852 = vadd.f32 %v850, %v851
    %v853 = vrot.slane %v852, 1
    %v854 = vadd.f32 %v852, %v853
    %s855 = vtos %v854
    %s856 = sadd.f32 %s855, 0.0
    %s857 = scalar_lea.vmem %s14, 64
    %v858 = vld [vmem:[%s857] sm:$0xff]
    %v859 = vld [vmem:[%s857 + $0x8] sm:$0xff]
    %v860 = vld [vmem:[%s857 + $0x10] sm:$0xff]
    %v861 = vld [vmem:[%s857 + $0x18] sm:$0xff]
    %v862 = vld [vmem:[%s857 + $0x20] sm:$0xff]
    %v863 = vld [vmem:[%s857 + $0x28] sm:$0xff]
    %v864 = vld [vmem:[%s857 + $0x30] sm:$0xff]
    %v865 = vld [vmem:[%s857 + $0x38] sm:$0xff]
    %s866 = scalar_lea.vmem %s15, 40
    %v867 = vld [vmem:[%s866] sm:$0xff]
    %v868 = vld [vmem:[%s866 + $0x8] sm:$0xff]
    %v869 = vld [vmem:[%s866 + $0x10] sm:$0xff]
    %v870 = vld [vmem:[%s866 + $0x18] sm:$0xff]
    %v871 = vld [vmem:[%s866 + $0x20] sm:$0xff]
    %872 = vmatprep.subr.mxu0 0.0
    %873 = vmatpush1.msra.mxu0 %v858
    %874 = vmatprep.subr.mxu0 0.0
    %875 = vmatpush1.msra.mxu0 %v859
    %876 = vmatprep.subr.mxu0 0.0
    %877 = vmatpush1.msra.mxu0 %v860
    %878 = vmatprep.subr.mxu0 0.0
    %879 = vmatpush1.msra.mxu0 %v861
    %880 = vmatprep.subr.mxu0 0.0
    %881 = vmatpush1.msra.mxu0 %v862
    %882 = vmatprep.subr.mxu0 0.0
    %883 = vmatpush1.msra.mxu0 %v863
    %884 = vmatprep.subr.mxu0 0.0
    %885 = vmatpush1.msra.mxu0 %v864
    %886 = vmatprep.subr.mxu0 0.0
    %887 = vmatpush1.msra.mxu0 %v865
    %888 = vmatprep.subr.mxu0 0.0
    %889 = vmatpush1.msra.mxu0 0.0
    %890 = vmatprep.subr.mxu0 0.0
    %891 = vmatpush1.msra.mxu0 0.0
    %892 = vmatprep.subr.mxu0 0.0
    %893 = vmatpush1.msra.mxu0 0.0
    %894 = vmatprep.subr.mxu0 0.0
    %895 = vmatpush1.msra.mxu0 0.0
    %896 = vmatprep.subr.mxu0 0.0
    %897 = vmatpush1.msra.mxu0 0.0
    %898 = vmatprep.subr.mxu0 0.0
    %899 = vmatpush1.msra.mxu0 0.0
    %900 = vmatprep.subr.mxu0 0.0
    %901 = vmatpush1.msra.mxu0 0.0
    %902 = vmatprep.subr.mxu0 0.0
    %903 = vmatpush1.msra.mxu0 0.0
    %904 = vmatprep.subr.mxu0 0.0
    %905 = vmatpush1.msra.mxu0 0.0
    %906 = vmatprep.subr.mxu0 0.0
    %907 = vmatpush1.msra.mxu0 0.0
    %908 = vmatprep.subr.mxu0 0.0
    %909 = vmatpush1.msra.mxu0 0.0
    %910 = vmatprep.subr.mxu0 0.0
    %911 = vmatpush1.msra.mxu0 0.0
    %912 = vmatprep.subr.mxu0 0.0
    %913 = vmatpush1.msra.mxu0 0.0
    %914 = vmatprep.subr.mxu0 0.0
    %915 = vmatpush1.msra.mxu0 0.0
    %916 = vmatprep.subr.mxu0 0.0
    %917 = vmatpush1.msra.mxu0 0.0
    %918 = vmatprep.subr.mxu0 0.0
    %919 = vmatpush1.msra.mxu0 0.0
    %920 = vmatprep.subr.mxu0 0.0
    %921 = vmatpush1.msra.mxu0 0.0
    %922 = vmatprep.subr.mxu0 0.0
    %923 = vmatpush1.msra.mxu0 0.0
    %924 = vmatprep.subr.mxu0 0.0
    %925 = vmatpush1.msra.mxu0 0.0
    %926 = vmatprep.subr.mxu0 0.0
    %927 = vmatpush1.msra.mxu0 0.0
    %928 = vmatprep.subr.mxu0 0.0
    %929 = vmatpush1.msra.mxu0 0.0
    %930 = vmatprep.subr.mxu0 0.0
    %931 = vmatpush1.msra.mxu0 0.0
    %932 = vmatprep.subr.mxu0 0.0
    %933 = vmatpush1.msra.mxu0 0.0
    %934 = vmatprep.subr.mxu0 0.0
    %935 = vmatpush1.msra.mxu0 0.0
    %936 = vmatprep.mubr.f32.mxu0 0.0
    %937 = vmatmul.mubr.f32.gmra.mrb[0].mxu0 %v723
    %v938 = vpop.f32.mrb[0].mxu0
    %v939 = vadd.f32 %v700, %v938
    %v940 = vpop.f32.mrb[0].mxu0
    %941 = vmatprep.mubr.f32.mxu0 0.0
    %942 = vmatmul.mubr.f32.gmra.mrb[0].mxu0 %v726
    %v943 = vpop.f32.mrb[0].mxu0
    %v944 = vadd.f32 %v705, %v943
    %v945 = vpop.f32.mrb[0].mxu0
    %946 = vmatprep.mubr.f32.mxu0 0.0
    %947 = vmatmul.mubr.f32.gmra.mrb[0].mxu0 %v729
    %v948 = vpop.f32.mrb[0].mxu0
    %v949 = vadd.f32 %v710, %v948
    %v950 = vpop.f32.mrb[0].mxu0
    %951 = vmatprep.mubr.f32.mxu0 0.0
    %952 = vmatmul.mubr.f32.gmra.mrb[0].mxu0 %v732
    %v953 = vpop.f32.mrb[0].mxu0
    %v954 = vadd.f32 %v715, %v953
    %v955 = vpop.f32.mrb[0].mxu0
    %956 = vmatprep.mubr.f32.mxu0 0.0
    %957 = vmatmul.mubr.f32.gmra.mrb[0].mxu0 %v735
    %v958 = vpop.f32.mrb[0].mxu0
    %v959 = vadd.f32 %v720, %v958
    %v960 = vpop.f32.mrb[0].mxu0
    %961 = vdwg.mxu0
    %v962 = vsub.f32 %v939, %v867
    %v963 = vsub.f32 %v944, %v868
    %v964 = vsub.f32 %v949, %v869
    %v965 = vsub.f32 %v954, %v870
    %v966 = vsub.f32 %v959, %v871
    %v967 = vmul.f32 %v962, %v962
    %v968 = vmul.f32 %v963, %v963
    %v969 = vmul.f32 %v964, %v964
    %v970 = vmul.f32 %v965, %v965
    %v971 = vmul.f32 %v966, %v966
    %v972 = vsel %vm837, %v967, 0.0
    %v973 = vsel %vm837, %v968, 0.0
    %v974 = vadd.f32 %v972, %v973
    %v975 = vsel %vm837, %v969, 0.0
    %v976 = vadd.f32 %v974, %v975
    %v977 = vsel %vm837, %v970, 0.0
    %v978 = vadd.f32 %v976, %v977
    %v979 = vsel %vm837, %v971, 0.0
    %v980 = vadd.f32 %v978, %v979
    %981 = vadd.xlane.f32.xlu0 %v980
    %v982 = vpop.xlane.xlu0 %981
    %v983 = vrot.slane %v982, 4
    %v984 = vadd.f32 %v982, %v983
    %v985 = vrot.slane %v984, 2
    %v986 = vadd.f32 %v984, %v985
    %v987 = vrot.slane %v986, 1
    %v988 = vadd.f32 %v986, %v987
    %s989 = vtos %v988
    %s990 = sadd.f32 %s856, %s989
    %v991 = vrcp.pop 1280.0
    %s992 = vtos %v991
    %s993 = smul.f32 %s990, %s992
    %v994 = vld [vmem:[%s20] sm:$0xff]
    %v995 = vld [vmem:[%s20 + $0x8] sm:$0xff]
    %v996 = vld [vmem:[%s20 + $0x10] sm:$0xff]
    %v997 = vld [vmem:[%s20 + $0x18] sm:$0xff]
    %v998 = vld [vmem:[%s20 + $0x20] sm:$0xff]
    %v999 = vld [vmem:[%s20 + $0x28] sm:$0xff]
    %v1000 = vld [vmem:[%s20 + $0x30] sm:$0xff]
    %v1001 = vld [vmem:[%s20 + $0x38] sm:$0xff]
    %v1002 = vld [vmem:[%s20 + $0x40] sm:$0xff]
    %v1003 = vld [vmem:[%s20 + $0x48] sm:$0xff]
    %v1004 = vld [vmem:[%s20 + $0x50] sm:$0xff]
    %v1005 = vld [vmem:[%s20 + $0x58] sm:$0xff]
    %v1006 = vld [vmem:[%s20 + $0x60] sm:$0xff]
    %v1007 = vld [vmem:[%s20 + $0x68] sm:$0xff]
    %v1008 = vld [vmem:[%s21] sm:$0xff]
    %v1009 = vld [vmem:[%s21 + $0x8] sm:$0xff]
    %v1010 = vld [vmem:[%s21 + $0x10] sm:$0xff]
    %v1011 = vld [vmem:[%s21 + $0x18] sm:$0xff]
    %v1012 = vld [vmem:[%s21 + $0x20] sm:$0xff]
    %v1013 = vld [vmem:[%s21 + $0x28] sm:$0xff]
    %v1014 = vld [vmem:[%s21 + $0x30] sm:$0xff]
    %v1015 = vld [vmem:[%s21 + $0x38] sm:$0xff]
    %v1016 = vld [vmem:[%s21 + $0x40] sm:$0xff]
    %v1017 = vld [vmem:[%s21 + $0x48] sm:$0xff]
    %v1018 = vld [vmem:[%s21 + $0x50] sm:$0xff]
    %v1019 = vld [vmem:[%s21 + $0x58] sm:$0xff]
    %v1020 = vld [vmem:[%s21 + $0x60] sm:$0xff]
    %v1021 = vld [vmem:[%s21 + $0x68] sm:$0xff]
    %v1022 = vld [vmem:[%s18] sm:$0xff]
    %v1023 = vld [vmem:[%s18 + $0x8] sm:$0xff]
    %v1024 = vld [vmem:[%s18 + $0x10] sm:$0xff]
    %v1025 = vld [vmem:[%s18 + $0x18] sm:$0xff]
    %v1026 = vld [vmem:[%s18 + $0x20] sm:$0xff]
    %v1027 = vld [vmem:[%s18 + $0x28] sm:$0xff]
    %v1028 = vld [vmem:[%s18 + $0x30] sm:$0xff]
    %v1029 = vld [vmem:[%s18 + $0x38] sm:$0xff]
    %v1030 = vld [vmem:[%s18 + $0x40] sm:$0xff]
    %v1031 = vld [vmem:[%s18 + $0x48] sm:$0xff]
    %v1032 = vld [vmem:[%s18 + $0x50] sm:$0xff]
    %v1033 = vld [vmem:[%s18 + $0x58] sm:$0xff]
    %v1034 = vld [vmem:[%s19] sm:$0xff]
    %v1035 = vld [vmem:[%s19 + $0x8] sm:$0xff]
    %v1036 = vld [vmem:[%s19 + $0x10] sm:$0xff]
    %v1037 = vld [vmem:[%s19 + $0x18] sm:$0xff]
    %v1038 = vld [vmem:[%s19 + $0x20] sm:$0xff]
    %v1039 = vld [vmem:[%s19 + $0x28] sm:$0xff]
    %v1040 = vld [vmem:[%s19 + $0x30] sm:$0xff]
    %v1041 = vld [vmem:[%s19 + $0x38] sm:$0xff]
    %v1042 = vld [vmem:[%s19 + $0x40] sm:$0xff]
    %v1043 = vld [vmem:[%s19 + $0x48] sm:$0xff]
    %v1044 = vld [vmem:[%s19 + $0x50] sm:$0xff]
    %v1045 = vld [vmem:[%s19 + $0x58] sm:$0xff]
    %v1046 = vld [vmem:[%s19 + $0x60] sm:$0xff]
    %v1047 = vld [vmem:[%s19 + $0x68] sm:$0xff]
    %1049 = vset.pattern.permute.xlu0 0
    %1050 = vperm.xlu0 %1049, %v1008
    %v1051 = vpop.permute.xlu0 %1050
    %1054 = vset.pattern.permute.xlu0 0
    %1055 = vperm.xlu0 %1054, %v1009
    %v1056 = vpop.permute.xlu0 %1055
    %1059 = vset.pattern.permute.xlu0 0
    %1060 = vperm.xlu0 %1059, %v1010
    %v1061 = vpop.permute.xlu0 %1060
    %1064 = vset.pattern.permute.xlu0 0
    %1065 = vperm.xlu0 %1064, %v1011
    %v1066 = vpop.permute.xlu0 %1065
    %1069 = vset.pattern.permute.xlu0 0
    %1070 = vperm.xlu0 %1069, %v1012
    %v1071 = vpop.permute.xlu0 %1070
    %1074 = vset.pattern.permute.xlu0 0
    %1075 = vperm.xlu0 %1074, %v1013
    %v1076 = vpop.permute.xlu0 %1075
    %1079 = vset.pattern.permute.xlu0 0
    %1080 = vperm.xlu0 %1079, %v1014
    %v1081 = vpop.permute.xlu0 %1080
    %1084 = vset.pattern.permute.xlu0 0
    %1085 = vperm.xlu0 %1084, %v1015
    %v1086 = vpop.permute.xlu0 %1085
    %1089 = vset.pattern.permute.xlu0 0
    %1090 = vperm.xlu0 %1089, %v1016
    %v1091 = vpop.permute.xlu0 %1090
    %1094 = vset.pattern.permute.xlu0 0
    %1095 = vperm.xlu0 %1094, %v1017
    %v1096 = vpop.permute.xlu0 %1095
    %1099 = vset.pattern.permute.xlu0 0
    %1100 = vperm.xlu0 %1099, %v1018
    %v1101 = vpop.permute.xlu0 %1100
    %1104 = vset.pattern.permute.xlu0 0
    %1105 = vperm.xlu0 %1104, %v1019
    %v1106 = vpop.permute.xlu0 %1105
    %1109 = vset.pattern.permute.xlu0 0
    %1110 = vperm.xlu0 %1109, %v1020
    %v1111 = vpop.permute.xlu0 %1110
    %1114 = vset.pattern.permute.xlu0 0
    %1115 = vperm.xlu0 %1114, %v1021
    %v1116 = vpop.permute.xlu0 %1115
    %vm1118 = vcmask 785408
    %v1120 = vsel %vm1118, %v994, 0
    %v1123 = vsel %vm1118, %v995, 0
    %v1126 = vsel %vm1118, %v996, 0
    %v1129 = vsel %vm1118, %v997, 0
    %v1132 = vsel %vm1118, %v998, 0
    %v1135 = vsel %vm1118, %v999, 0
    %v1138 = vsel %vm1118, %v1000, 0
    %v1141 = vsel %vm1118, %v1001, 0
    %v1144 = vsel %vm1118, %v1002, 0
    %v1147 = vsel %vm1118, %v1003, 0
    %v1150 = vsel %vm1118, %v1004, 0
    %v1153 = vsel %vm1118, %v1005, 0
    %v1156 = vsel %vm1118, %v1006, 0
    %v1159 = vsel %vm1118, %v1007, 0
    %1161 = vmatprep.subr.mxu0 0.0
    %1162 = vmatpush1.msra.mxu0 %v1022
    %1163 = vmatprep.subr.mxu0 0.0
    %1164 = vmatpush1.msra.mxu0 %v1023
    %1165 = vmatprep.subr.mxu0 0.0
    %1166 = vmatpush1.msra.mxu0 %v1024
    %1167 = vmatprep.subr.mxu0 0.0
    %1168 = vmatpush1.msra.mxu0 %v1025
    %1169 = vmatprep.subr.mxu0 0.0
    %1170 = vmatpush1.msra.mxu0 %v1026
    %1171 = vmatprep.subr.mxu0 0.0
    %1172 = vmatpush1.msra.mxu0 %v1027
    %1173 = vmatprep.subr.mxu0 0.0
    %1174 = vmatpush1.msra.mxu0 %v1028
    %1175 = vmatprep.subr.mxu0 0.0
    %1176 = vmatpush1.msra.mxu0 %v1029
    %1177 = vmatprep.subr.mxu0 0.0
    %1178 = vmatpush1.msra.mxu0 %v1030
    %1179 = vmatprep.subr.mxu0 0.0
    %1180 = vmatpush1.msra.mxu0 %v1031
    %1181 = vmatprep.subr.mxu0 0.0
    %1182 = vmatpush1.msra.mxu0 %v1032
    %1183 = vmatprep.subr.mxu0 0.0
    %1184 = vmatpush1.msra.mxu0 %v1033
    %1185 = vmatprep.subr.mxu0 0.0
    %1186 = vmatpush1.msra.mxu0 0.0
    %1187 = vmatprep.subr.mxu0 0.0
    %1188 = vmatpush1.msra.mxu0 0.0
    %1189 = vmatprep.subr.mxu0 0.0
    %1190 = vmatpush1.msra.mxu0 0.0
    %1191 = vmatprep.subr.mxu0 0.0
    %1192 = vmatpush1.msra.mxu0 0.0
    %1193 = vmatprep.subr.mxu0 0.0
    %1194 = vmatpush1.msra.mxu0 0.0
    %1195 = vmatprep.subr.mxu0 0.0
    %1196 = vmatpush1.msra.mxu0 0.0
    %1197 = vmatprep.subr.mxu0 0.0
    %1198 = vmatpush1.msra.mxu0 0.0
    %1199 = vmatprep.subr.mxu0 0.0
    %1200 = vmatpush1.msra.mxu0 0.0
    %1201 = vmatprep.subr.mxu0 0.0
    %1202 = vmatpush1.msra.mxu0 0.0
    %1203 = vmatprep.subr.mxu0 0.0
    %1204 = vmatpush1.msra.mxu0 0.0
    %1205 = vmatprep.subr.mxu0 0.0
    %1206 = vmatpush1.msra.mxu0 0.0
    %1207 = vmatprep.subr.mxu0 0.0
    %1208 = vmatpush1.msra.mxu0 0.0
    %1209 = vmatprep.subr.mxu0 0.0
    %1210 = vmatpush1.msra.mxu0 0.0
    %1211 = vmatprep.subr.mxu0 0.0
    %1212 = vmatpush1.msra.mxu0 0.0
    %1213 = vmatprep.subr.mxu0 0.0
    %1214 = vmatpush1.msra.mxu0 0.0
    %1215 = vmatprep.subr.mxu0 0.0
    %1216 = vmatpush1.msra.mxu0 0.0
    %1217 = vmatprep.subr.mxu0 0.0
    %1218 = vmatpush1.msra.mxu0 0.0
    %1219 = vmatprep.subr.mxu0 0.0
    %1220 = vmatpush1.msra.mxu0 0.0
    %1221 = vmatprep.subr.mxu0 0.0
    %1222 = vmatpush1.msra.mxu0 0.0
    %1223 = vmatprep.subr.mxu0 0.0
    %1224 = vmatpush1.msra.mxu0 0.0
    %1225 = vmatprep.mubr.f32.mxu0 0.0
    %1226 = vmatmul.mubr.f32.gmra.mrb[0].mxu0 %v1120
    %v1227 = vpop.f32.mrb[0].mxu0
    %v1228 = vadd.f32 %v1051, %v1227
    %v1229 = vpop.f32.mrb[0].mxu0
    %1230 = vmatprep.mubr.f32.mxu0 0.0
    %1231 = vmatmul.mubr.f32.gmra.mrb[0].mxu0 %v1123
    %v1232 = vpop.f32.mrb[0].mxu0
    %v1233 = vadd.f32 %v1056, %v1232
    %v1234 = vpop.f32.mrb[0].mxu0
    %1235 = vmatprep.mubr.f32.mxu0 0.0
    %1236 = vmatmul.mubr.f32.gmra.mrb[0].mxu0 %v1126
    %v1237 = vpop.f32.mrb[0].mxu0
    %v1238 = vadd.f32 %v1061, %v1237
    %v1239 = vpop.f32.mrb[0].mxu0
    %1240 = vmatprep.mubr.f32.mxu0 0.0
    %1241 = vmatmul.mubr.f32.gmra.mrb[0].mxu0 %v1129
    %v1242 = vpop.f32.mrb[0].mxu0
    %v1243 = vadd.f32 %v1066, %v1242
    %v1244 = vpop.f32.mrb[0].mxu0
    %1245 = vmatprep.mubr.f32.mxu0 0.0
    %1246 = vmatmul.mubr.f32.gmra.mrb[0].mxu0 %v1132
    %v1247 = vpop.f32.mrb[0].mxu0
    %v1248 = vadd.f32 %v1071, %v1247
    %v1249 = vpop.f32.mrb[0].mxu0
    %1250 = vmatprep.mubr.f32.mxu0 0.0
    %1251 = vmatmul.mubr.f32.gmra.mrb[0].mxu0 %v1135
    %v1252 = vpop.f32.mrb[0].mxu0
    %v1253 = vadd.f32 %v1076, %v1252
    %v1254 = vpop.f32.mrb[0].mxu0
    %1255 = vmatprep.mubr.f32.mxu0 0.0
    %1256 = vmatmul.mubr.f32.gmra.mrb[0].mxu0 %v1138
    %v1257 = vpop.f32.mrb[0].mxu0
    %v1258 = vadd.f32 %v1081, %v1257
    %v1259 = vpop.f32.mrb[0].mxu0
    %1260 = vmatprep.mubr.f32.mxu0 0.0
    %1261 = vmatmul.mubr.f32.gmra.mrb[0].mxu0 %v1141
    %v1262 = vpop.f32.mrb[0].mxu0
    %v1263 = vadd.f32 %v1086, %v1262
    %v1264 = vpop.f32.mrb[0].mxu0
    %1265 = vmatprep.mubr.f32.mxu0 0.0
    %1266 = vmatmul.mubr.f32.gmra.mrb[0].mxu0 %v1144
    %v1267 = vpop.f32.mrb[0].mxu0
    %v1268 = vadd.f32 %v1091, %v1267
    %v1269 = vpop.f32.mrb[0].mxu0
    %1270 = vmatprep.mubr.f32.mxu0 0.0
    %1271 = vmatmul.mubr.f32.gmra.mrb[0].mxu0 %v1147
    %v1272 = vpop.f32.mrb[0].mxu0
    %v1273 = vadd.f32 %v1096, %v1272
    %v1274 = vpop.f32.mrb[0].mxu0
    %1275 = vmatprep.mubr.f32.mxu0 0.0
    %1276 = vmatmul.mubr.f32.gmra.mrb[0].mxu0 %v1150
    %v1277 = vpop.f32.mrb[0].mxu0
    %v1278 = vadd.f32 %v1101, %v1277
    %v1279 = vpop.f32.mrb[0].mxu0
    %1280 = vmatprep.mubr.f32.mxu0 0.0
    %1281 = vmatmul.mubr.f32.gmra.mrb[0].mxu0 %v1153
    %v1282 = vpop.f32.mrb[0].mxu0
    %v1283 = vadd.f32 %v1106, %v1282
    %v1284 = vpop.f32.mrb[0].mxu0
    %1285 = vmatprep.mubr.f32.mxu0 0.0
    %1286 = vmatmul.mubr.f32.gmra.mrb[0].mxu0 %v1156
    %v1287 = vpop.f32.mrb[0].mxu0
    %v1288 = vadd.f32 %v1111, %v1287
    %v1289 = vpop.f32.mrb[0].mxu0
    %1290 = vmatprep.mubr.f32.mxu0 0.0
    %1291 = vmatmul.mubr.f32.gmra.mrb[0].mxu0 %v1159
    %v1292 = vpop.f32.mrb[0].mxu0
    %v1293 = vadd.f32 %v1116, %v1292
    %v1294 = vpop.f32.mrb[0].mxu0
    %1295 = vdwg.mxu0
    %v1296 = vsub.f32 %v1228, %v1034
    %v1297 = vsub.f32 %v1233, %v1035
    %v1298 = vsub.f32 %v1238, %v1036
    %v1299 = vsub.f32 %v1243, %v1037
    %v1300 = vsub.f32 %v1248, %v1038
    %v1301 = vsub.f32 %v1253, %v1039
    %v1302 = vsub.f32 %v1258, %v1040
    %v1303 = vsub.f32 %v1263, %v1041
    %v1304 = vsub.f32 %v1268, %v1042
    %v1305 = vsub.f32 %v1273, %v1043
    %v1306 = vsub.f32 %v1278, %v1044
    %v1307 = vsub.f32 %v1283, %v1045
    %v1308 = vsub.f32 %v1288, %v1046
    %v1309 = vsub.f32 %v1293, %v1047
    %v1310 = vmul.f32 %v1296, %v1296
    %v1311 = vmul.f32 %v1297, %v1297
    %v1312 = vmul.f32 %v1298, %v1298
    %v1313 = vmul.f32 %v1299, %v1299
    %v1314 = vmul.f32 %v1300, %v1300
    %v1315 = vmul.f32 %v1301, %v1301
    %v1316 = vmul.f32 %v1302, %v1302
    %v1317 = vmul.f32 %v1303, %v1303
    %v1318 = vmul.f32 %v1304, %v1304
    %v1319 = vmul.f32 %v1305, %v1305
    %v1320 = vmul.f32 %v1306, %v1306
    %v1321 = vmul.f32 %v1307, %v1307
    %v1322 = vmul.f32 %v1308, %v1308
    %v1323 = vmul.f32 %v1309, %v1309
    %v1324 = vsel %vm837, %v1310, 0.0
    %v1325 = vsel %vm837, %v1311, 0.0
    %v1326 = vadd.f32 %v1324, %v1325
    %v1327 = vsel %vm837, %v1312, 0.0
    %v1328 = vadd.f32 %v1326, %v1327
    %v1329 = vsel %vm837, %v1313, 0.0
    %v1330 = vadd.f32 %v1328, %v1329
    %v1331 = vsel %vm837, %v1314, 0.0
    %v1332 = vadd.f32 %v1330, %v1331
    %v1333 = vsel %vm837, %v1315, 0.0
    %v1334 = vadd.f32 %v1332, %v1333
    %v1335 = vsel %vm837, %v1316, 0.0
    %v1336 = vadd.f32 %v1334, %v1335
    %v1337 = vsel %vm837, %v1317, 0.0
    %v1338 = vadd.f32 %v1336, %v1337
    %v1339 = vsel %vm837, %v1318, 0.0
    %v1340 = vadd.f32 %v1338, %v1339
    %v1341 = vsel %vm837, %v1319, 0.0
    %v1342 = vadd.f32 %v1340, %v1341
    %v1343 = vsel %vm837, %v1320, 0.0
    %v1344 = vadd.f32 %v1342, %v1343
    %v1345 = vsel %vm837, %v1321, 0.0
    %v1346 = vadd.f32 %v1344, %v1345
    %v1347 = vsel %vm837, %v1322, 0.0
    %v1348 = vadd.f32 %v1346, %v1347
    %v1349 = vsel %vm837, %v1323, 0.0
    %v1350 = vadd.f32 %v1348, %v1349
    %1351 = vadd.xlane.f32.xlu0 %v1350
    %v1352 = vpop.xlane.xlu0 %1351
    %v1353 = vrot.slane %v1352, 4
    %v1354 = vadd.f32 %v1352, %v1353
    %v1355 = vrot.slane %v1354, 2
    %v1356 = vadd.f32 %v1354, %v1355
    %v1357 = vrot.slane %v1356, 1
    %v1358 = vadd.f32 %v1356, %v1357
    %s1359 = vtos %v1358
    %s1360 = sadd.f32 %s1359, 0.0
    %s1361 = scalar_lea.vmem %s18, 96
    %v1362 = vld [vmem:[%s1361] sm:$0xff]
    %v1363 = vld [vmem:[%s1361 + $0x8] sm:$0xff]
    %v1364 = vld [vmem:[%s1361 + $0x10] sm:$0xff]
    %v1365 = vld [vmem:[%s1361 + $0x18] sm:$0xff]
    %v1366 = vld [vmem:[%s1361 + $0x20] sm:$0xff]
    %v1367 = vld [vmem:[%s1361 + $0x28] sm:$0xff]
    %v1368 = vld [vmem:[%s1361 + $0x30] sm:$0xff]
    %v1369 = vld [vmem:[%s1361 + $0x38] sm:$0xff]
    %v1370 = vld [vmem:[%s1361 + $0x40] sm:$0xff]
    %v1371 = vld [vmem:[%s1361 + $0x48] sm:$0xff]
    %v1372 = vld [vmem:[%s1361 + $0x50] sm:$0xff]
    %v1373 = vld [vmem:[%s1361 + $0x58] sm:$0xff]
    %s1374 = scalar_lea.vmem %s19, 112
    %v1375 = vld [vmem:[%s1374] sm:$0xff]
    %v1376 = vld [vmem:[%s1374 + $0x8] sm:$0xff]
    %v1377 = vld [vmem:[%s1374 + $0x10] sm:$0xff]
    %v1378 = vld [vmem:[%s1374 + $0x18] sm:$0xff]
    %v1379 = vld [vmem:[%s1374 + $0x20] sm:$0xff]
    %v1380 = vld [vmem:[%s1374 + $0x28] sm:$0xff]
    %v1381 = vld [vmem:[%s1374 + $0x30] sm:$0xff]
    %v1382 = vld [vmem:[%s1374 + $0x38] sm:$0xff]
    %v1383 = vld [vmem:[%s1374 + $0x40] sm:$0xff]
    %v1384 = vld [vmem:[%s1374 + $0x48] sm:$0xff]
    %v1385 = vld [vmem:[%s1374 + $0x50] sm:$0xff]
    %v1386 = vld [vmem:[%s1374 + $0x58] sm:$0xff]
    %v1387 = vld [vmem:[%s1374 + $0x60] sm:$0xff]
    %v1388 = vld [vmem:[%s1374 + $0x68] sm:$0xff]
    %1389 = vmatprep.subr.mxu0 0.0
    %1390 = vmatpush1.msra.mxu0 %v1362
    %1391 = vmatprep.subr.mxu0 0.0
    %1392 = vmatpush1.msra.mxu0 %v1363
    %1393 = vmatprep.subr.mxu0 0.0
    %1394 = vmatpush1.msra.mxu0 %v1364
    %1395 = vmatprep.subr.mxu0 0.0
    %1396 = vmatpush1.msra.mxu0 %v1365
    %1397 = vmatprep.subr.mxu0 0.0
    %1398 = vmatpush1.msra.mxu0 %v1366
    %1399 = vmatprep.subr.mxu0 0.0
    %1400 = vmatpush1.msra.mxu0 %v1367
    %1401 = vmatprep.subr.mxu0 0.0
    %1402 = vmatpush1.msra.mxu0 %v1368
    %1403 = vmatprep.subr.mxu0 0.0
    %1404 = vmatpush1.msra.mxu0 %v1369
    %1405 = vmatprep.subr.mxu0 0.0
    %1406 = vmatpush1.msra.mxu0 %v1370
    %1407 = vmatprep.subr.mxu0 0.0
    %1408 = vmatpush1.msra.mxu0 %v1371
    %1409 = vmatprep.subr.mxu0 0.0
    %1410 = vmatpush1.msra.mxu0 %v1372
    %1411 = vmatprep.subr.mxu0 0.0
    %1412 = vmatpush1.msra.mxu0 %v1373
    %1413 = vmatprep.subr.mxu0 0.0
    %1414 = vmatpush1.msra.mxu0 0.0
    %1415 = vmatprep.subr.mxu0 0.0
    %1416 = vmatpush1.msra.mxu0 0.0
    %1417 = vmatprep.subr.mxu0 0.0
    %1418 = vmatpush1.msra.mxu0 0.0
    %1419 = vmatprep.subr.mxu0 0.0
    %1420 = vmatpush1.msra.mxu0 0.0
    %1421 = vmatprep.subr.mxu0 0.0
    %1422 = vmatpush1.msra.mxu0 0.0
    %1423 = vmatprep.subr.mxu0 0.0
    %1424 = vmatpush1.msra.mxu0 0.0
    %1425 = vmatprep.subr.mxu0 0.0
    %1426 = vmatpush1.msra.mxu0 0.0
    %1427 = vmatprep.subr.mxu0 0.0
    %1428 = vmatpush1.msra.mxu0 0.0
    %1429 = vmatprep.subr.mxu0 0.0
    %1430 = vmatpush1.msra.mxu0 0.0
    %1431 = vmatprep.subr.mxu0 0.0
    %1432 = vmatpush1.msra.mxu0 0.0
    %1433 = vmatprep.subr.mxu0 0.0
    %1434 = vmatpush1.msra.mxu0 0.0
    %1435 = vmatprep.subr.mxu0 0.0
    %1436 = vmatpush1.msra.mxu0 0.0
    %1437 = vmatprep.subr.mxu0 0.0
    %1438 = vmatpush1.msra.mxu0 0.0
    %1439 = vmatprep.subr.mxu0 0.0
    %1440 = vmatpush1.msra.mxu0 0.0
    %1441 = vmatprep.subr.mxu0 0.0
    %1442 = vmatpush1.msra.mxu0 0.0
    %1443 = vmatprep.subr.mxu0 0.0
    %1444 = vmatpush1.msra.mxu0 0.0
    %1445 = vmatprep.subr.mxu0 0.0
    %1446 = vmatpush1.msra.mxu0 0.0
    %1447 = vmatprep.subr.mxu0 0.0
    %1448 = vmatpush1.msra.mxu0 0.0
    %1449 = vmatprep.subr.mxu0 0.0
    %1450 = vmatpush1.msra.mxu0 0.0
    %1451 = vmatprep.subr.mxu0 0.0
    %1452 = vmatpush1.msra.mxu0 0.0
    %1453 = vmatprep.mubr.f32.mxu0 0.0
    %1454 = vmatmul.mubr.f32.gmra.mrb[0].mxu0 %v1120
    %v1455 = vpop.f32.mrb[0].mxu0
    %v1456 = vadd.f32 %v1051, %v1455
    %v1457 = vpop.f32.mrb[0].mxu0
    %1458 = vmatprep.mubr.f32.mxu0 0.0
    %1459 = vmatmul.mubr.f32.gmra.mrb[0].mxu0 %v1123
    %v1460 = vpop.f32.mrb[0].mxu0
    %v1461 = vadd.f32 %v1056, %v1460
    %v1462 = vpop.f32.mrb[0].mxu0
    %1463 = vmatprep.mubr.f32.mxu0 0.0
    %1464 = vmatmul.mubr.f32.gmra.mrb[0].mxu0 %v1126
    %v1465 = vpop.f32.mrb[0].mxu0
    %v1466 = vadd.f32 %v1061, %v1465
    %v1467 = vpop.f32.mrb[0].mxu0
    %1468 = vmatprep.mubr.f32.mxu0 0.0
    %1469 = vmatmul.mubr.f32.gmra.mrb[0].mxu0 %v1129
    %v1470 = vpop.f32.mrb[0].mxu0
    %v1471 = vadd.f32 %v1066, %v1470
    %v1472 = vpop.f32.mrb[0].mxu0
    %1473 = vmatprep.mubr.f32.mxu0 0.0
    %1474 = vmatmul.mubr.f32.gmra.mrb[0].mxu0 %v1132
    %v1475 = vpop.f32.mrb[0].mxu0
    %v1476 = vadd.f32 %v1071, %v1475
    %v1477 = vpop.f32.mrb[0].mxu0
    %1478 = vmatprep.mubr.f32.mxu0 0.0
    %1479 = vmatmul.mubr.f32.gmra.mrb[0].mxu0 %v1135
    %v1480 = vpop.f32.mrb[0].mxu0
    %v1481 = vadd.f32 %v1076, %v1480
    %v1482 = vpop.f32.mrb[0].mxu0
    %1483 = vmatprep.mubr.f32.mxu0 0.0
    %1484 = vmatmul.mubr.f32.gmra.mrb[0].mxu0 %v1138
    %v1485 = vpop.f32.mrb[0].mxu0
    %v1486 = vadd.f32 %v1081, %v1485
    %v1487 = vpop.f32.mrb[0].mxu0
    %1488 = vmatprep.mubr.f32.mxu0 0.0
    %1489 = vmatmul.mubr.f32.gmra.mrb[0].mxu0 %v1141
    %v1490 = vpop.f32.mrb[0].mxu0
    %v1491 = vadd.f32 %v1086, %v1490
    %v1492 = vpop.f32.mrb[0].mxu0
    %1493 = vmatprep.mubr.f32.mxu0 0.0
    %1494 = vmatmul.mubr.f32.gmra.mrb[0].mxu0 %v1144
    %v1495 = vpop.f32.mrb[0].mxu0
    %v1496 = vadd.f32 %v1091, %v1495
    %v1497 = vpop.f32.mrb[0].mxu0
    %1498 = vmatprep.mubr.f32.mxu0 0.0
    %1499 = vmatmul.mubr.f32.gmra.mrb[0].mxu0 %v1147
    %v1500 = vpop.f32.mrb[0].mxu0
    %v1501 = vadd.f32 %v1096, %v1500
    %v1502 = vpop.f32.mrb[0].mxu0
    %1503 = vmatprep.mubr.f32.mxu0 0.0
    %1504 = vmatmul.mubr.f32.gmra.mrb[0].mxu0 %v1150
    %v1505 = vpop.f32.mrb[0].mxu0
    %v1506 = vadd.f32 %v1101, %v1505
    %v1507 = vpop.f32.mrb[0].mxu0
    %1508 = vmatprep.mubr.f32.mxu0 0.0
    %1509 = vmatmul.mubr.f32.gmra.mrb[0].mxu0 %v1153
    %v1510 = vpop.f32.mrb[0].mxu0
    %v1511 = vadd.f32 %v1106, %v1510
    %v1512 = vpop.f32.mrb[0].mxu0
    %1513 = vmatprep.mubr.f32.mxu0 0.0
    %1514 = vmatmul.mubr.f32.gmra.mrb[0].mxu0 %v1156
    %v1515 = vpop.f32.mrb[0].mxu0
    %v1516 = vadd.f32 %v1111, %v1515
    %v1517 = vpop.f32.mrb[0].mxu0
    %1518 = vmatprep.mubr.f32.mxu0 0.0
    %1519 = vmatmul.mubr.f32.gmra.mrb[0].mxu0 %v1159
    %v1520 = vpop.f32.mrb[0].mxu0
    %v1521 = vadd.f32 %v1116, %v1520
    %v1522 = vpop.f32.mrb[0].mxu0
    %1523 = vdwg.mxu0
    %v1524 = vsub.f32 %v1456, %v1375
    %v1525 = vsub.f32 %v1461, %v1376
    %v1526 = vsub.f32 %v1466, %v1377
    %v1527 = vsub.f32 %v1471, %v1378
    %v1528 = vsub.f32 %v1476, %v1379
    %v1529 = vsub.f32 %v1481, %v1380
    %v1530 = vsub.f32 %v1486, %v1381
    %v1531 = vsub.f32 %v1491, %v1382
    %v1532 = vsub.f32 %v1496, %v1383
    %v1533 = vsub.f32 %v1501, %v1384
    %v1534 = vsub.f32 %v1506, %v1385
    %v1535 = vsub.f32 %v1511, %v1386
    %v1536 = vsub.f32 %v1516, %v1387
    %v1537 = vsub.f32 %v1521, %v1388
    %v1538 = vmul.f32 %v1524, %v1524
    %v1539 = vmul.f32 %v1525, %v1525
    %v1540 = vmul.f32 %v1526, %v1526
    %v1541 = vmul.f32 %v1527, %v1527
    %v1542 = vmul.f32 %v1528, %v1528
    %v1543 = vmul.f32 %v1529, %v1529
    %v1544 = vmul.f32 %v1530, %v1530
    %v1545 = vmul.f32 %v1531, %v1531
    %v1546 = vmul.f32 %v1532, %v1532
    %v1547 = vmul.f32 %v1533, %v1533
    %v1548 = vmul.f32 %v1534, %v1534
    %v1549 = vmul.f32 %v1535, %v1535
    %v1550 = vmul.f32 %v1536, %v1536
    %v1551 = vmul.f32 %v1537, %v1537
    %v1552 = vsel %vm837, %v1538, 0.0
    %v1553 = vsel %vm837, %v1539, 0.0
    %v1554 = vadd.f32 %v1552, %v1553
    %v1555 = vsel %vm837, %v1540, 0.0
    %v1556 = vadd.f32 %v1554, %v1555
    %v1557 = vsel %vm837, %v1541, 0.0
    %v1558 = vadd.f32 %v1556, %v1557
    %v1559 = vsel %vm837, %v1542, 0.0
    %v1560 = vadd.f32 %v1558, %v1559
    %v1561 = vsel %vm837, %v1543, 0.0
    %v1562 = vadd.f32 %v1560, %v1561
    %v1563 = vsel %vm837, %v1544, 0.0
    %v1564 = vadd.f32 %v1562, %v1563
    %v1565 = vsel %vm837, %v1545, 0.0
    %v1566 = vadd.f32 %v1564, %v1565
    %v1567 = vsel %vm837, %v1546, 0.0
    %v1568 = vadd.f32 %v1566, %v1567
    %v1569 = vsel %vm837, %v1547, 0.0
    %v1570 = vadd.f32 %v1568, %v1569
    %v1571 = vsel %vm837, %v1548, 0.0
    %v1572 = vadd.f32 %v1570, %v1571
    %v1573 = vsel %vm837, %v1549, 0.0
    %v1574 = vadd.f32 %v1572, %v1573
    %v1575 = vsel %vm837, %v1550, 0.0
    %v1576 = vadd.f32 %v1574, %v1575
    %v1577 = vsel %vm837, %v1551, 0.0
    %v1578 = vadd.f32 %v1576, %v1577
    %1579 = vadd.xlane.f32.xlu0 %v1578
    %v1580 = vpop.xlane.xlu0 %1579
    %v1581 = vrot.slane %v1580, 4
    %v1582 = vadd.f32 %v1580, %v1581
    %v1583 = vrot.slane %v1582, 2
    %v1584 = vadd.f32 %v1582, %v1583
    %v1585 = vrot.slane %v1584, 1
    %v1586 = vadd.f32 %v1584, %v1585
    %s1587 = vtos %v1586
    %s1588 = sadd.f32 %s1360, %s1587
    %v1589 = vrcp.pop 3584.0
    %s1590 = vtos %v1589
    %s1591 = smul.f32 %s1588, %s1590
    %v1592 = vld [vmem:[%s22] sm:$0xff]
    %v1593 = vld [vmem:[%s22 + $0x8] sm:$0xff]
    %v1594 = vld [vmem:[%s22 + $0x10] sm:$0xff]
    %v1595 = vld [vmem:[%s22 + $0x18] sm:$0xff]
    %v1596 = vld [vmem:[%s22 + $0x20] sm:$0xff]
    %v1597 = vld [vmem:[%s22 + $0x28] sm:$0xff]
    %v1598 = vld [vmem:[%s22 + $0x30] sm:$0xff]
    %v1599 = vld [vmem:[%s22 + $0x38] sm:$0xff]
    %v1600 = vld [vmem:[%s22 + $0x40] sm:$0xff]
    %v1601 = vld [vmem:[%s22 + $0x48] sm:$0xff]
    %v1602 = vld [vmem:[%s22 + $0x50] sm:$0xff]
    %v1603 = vld [vmem:[%s22 + $0x58] sm:$0xff]
    %v1604 = vld [vmem:[%s22 + $0x60] sm:$0xff]
    %v1605 = vld [vmem:[%s22 + $0x68] sm:$0xff]
    %v1606 = vld [vmem:[%s22 + $0x70] sm:$0xff]
    %v1607 = vld [vmem:[%s22 + $0x78] sm:$0xff]
    %v1608 = vld [vmem:[%s23] sm:$0xff]
    %v1609 = vld [vmem:[%s23 + $0x8] sm:$0xff]
    %v1610 = vld [vmem:[%s23 + $0x10] sm:$0xff]
    %v1611 = vld [vmem:[%s23 + $0x18] sm:$0xff]
    %v1612 = vld [vmem:[%s23 + $0x20] sm:$0xff]
    %v1613 = vld [vmem:[%s23 + $0x28] sm:$0xff]
    %v1614 = vld [vmem:[%s23 + $0x30] sm:$0xff]
    %v1615 = vld [vmem:[%s23 + $0x38] sm:$0xff]
    %v1616 = vld [vmem:[%s23 + $0x40] sm:$0xff]
    %v1617 = vld [vmem:[%s23 + $0x48] sm:$0xff]
    %v1618 = vld [vmem:[%s23 + $0x50] sm:$0xff]
    %v1619 = vld [vmem:[%s23 + $0x58] sm:$0xff]
    %v1620 = vld [vmem:[%s23 + $0x60] sm:$0xff]
    %v1621 = vld [vmem:[%s23 + $0x68] sm:$0xff]
    %v1622 = vld [vmem:[%s23 + $0x70] sm:$0xff]
    %v1623 = vld [vmem:[%s23 + $0x78] sm:$0xff]
    %v1624 = vsub.f32 %v1592, %v1608
    %v1625 = vsub.f32 %v1593, %v1609
    %v1626 = vsub.f32 %v1594, %v1610
    %v1627 = vsub.f32 %v1595, %v1611
    %v1628 = vsub.f32 %v1596, %v1612
    %v1629 = vsub.f32 %v1597, %v1613
    %v1630 = vsub.f32 %v1598, %v1614
    %v1631 = vsub.f32 %v1599, %v1615
    %v1632 = vsub.f32 %v1600, %v1616
    %v1633 = vsub.f32 %v1601, %v1617
    %v1634 = vsub.f32 %v1602, %v1618
    %v1635 = vsub.f32 %v1603, %v1619
    %v1636 = vsub.f32 %v1604, %v1620
    %v1637 = vsub.f32 %v1605, %v1621
    %v1638 = vsub.f32 %v1606, %v1622
    %v1639 = vsub.f32 %v1607, %v1623
    %v1640 = vmul.f32 %v1624, %v1624
    %v1641 = vmul.f32 %v1625, %v1625
    %v1642 = vmul.f32 %v1626, %v1626
    %v1643 = vmul.f32 %v1627, %v1627
    %v1644 = vmul.f32 %v1628, %v1628
    %v1645 = vmul.f32 %v1629, %v1629
    %v1646 = vmul.f32 %v1630, %v1630
    %v1647 = vmul.f32 %v1631, %v1631
    %v1648 = vmul.f32 %v1632, %v1632
    %v1649 = vmul.f32 %v1633, %v1633
    %v1650 = vmul.f32 %v1634, %v1634
    %v1651 = vmul.f32 %v1635, %v1635
    %v1652 = vmul.f32 %v1636, %v1636
    %v1653 = vmul.f32 %v1637, %v1637
    %v1654 = vmul.f32 %v1638, %v1638
    %v1655 = vmul.f32 %v1639, %v1639
    %v1656 = vsel %vm837, %v1640, 0.0
    %v1657 = vsel %vm837, %v1641, 0.0
    %v1658 = vadd.f32 %v1656, %v1657
    %v1659 = vsel %vm837, %v1642, 0.0
    %v1660 = vadd.f32 %v1658, %v1659
    %v1661 = vsel %vm837, %v1643, 0.0
    %v1662 = vadd.f32 %v1660, %v1661
    %v1663 = vsel %vm837, %v1644, 0.0
    %v1664 = vadd.f32 %v1662, %v1663
    %v1665 = vsel %vm837, %v1645, 0.0
    %v1666 = vadd.f32 %v1664, %v1665
    %v1667 = vsel %vm837, %v1646, 0.0
    %v1668 = vadd.f32 %v1666, %v1667
    %v1669 = vsel %vm837, %v1647, 0.0
    %v1670 = vadd.f32 %v1668, %v1669
    %v1671 = vsel %vm837, %v1648, 0.0
    %v1672 = vadd.f32 %v1670, %v1671
    %v1673 = vsel %vm837, %v1649, 0.0
    %v1674 = vadd.f32 %v1672, %v1673
    %v1675 = vsel %vm837, %v1650, 0.0
    %v1676 = vadd.f32 %v1674, %v1675
    %v1677 = vsel %vm837, %v1651, 0.0
    %v1678 = vadd.f32 %v1676, %v1677
    %v1679 = vsel %vm837, %v1652, 0.0
    %v1680 = vadd.f32 %v1678, %v1679
    %v1681 = vsel %vm837, %v1653, 0.0
    %v1682 = vadd.f32 %v1680, %v1681
    %v1683 = vsel %vm837, %v1654, 0.0
    %v1684 = vadd.f32 %v1682, %v1683
    %v1685 = vsel %vm837, %v1655, 0.0
    %v1686 = vadd.f32 %v1684, %v1685
    %1687 = vadd.xlane.f32.xlu0 %v1686
    %v1688 = vpop.xlane.xlu0 %1687
    %v1689 = vrot.slane %v1688, 4
    %v1690 = vadd.f32 %v1688, %v1689
    %v1691 = vrot.slane %v1690, 2
    %v1692 = vadd.f32 %v1690, %v1691
    %v1693 = vrot.slane %v1692, 1
    %v1694 = vadd.f32 %v1692, %v1693
    %s1695 = vtos %v1694
    %v1696 = vrcp.pop 2048.0
    %s1697 = vtos %v1696
    %s1698 = smul.f32 %s1695, %s1697
    %s1699 = smul.f32 %s422, 0.1
    %s1700 = smul.f32 %s673, 0.2
    %s1701 = sadd.f32 %s1699, %s1700
    %s1702 = smul.f32 %s993, 0.3
    %s1703 = sadd.f32 %s1701, %s1702
    %s1704 = smul.f32 %s1591, 0.2
    %s1705 = sadd.f32 %s1703, %s1704
    %s1706 = smul.f32 %s1698, 0.2
    %s1707 = sadd.f32 %s1705, %s1706
    %s1708 = sadd.f32 %s114, %s184
    %s1709 = sadd.f32 %s155, %s199
    %s1710 = sadd.f32 %s1709, %s1707
    %s1711 = smul.f32 %s1708, 0.5
    %s1712 = smul.f32 %s1710, 0.5
    %s1713 = sadd.f32 %s1711, %s1712
    %s1714 = scalar_lea.smem [#allocation2], 0
    %1715 = sst [smem:[%s1714]] %s1713
    %s1716 = scalar_lea.smem [#allocation2], 1
    %1717 = sst [smem:[%s1716]] %s114
    %s1718 = scalar_lea.smem [#allocation2], 2
    %1719 = sst [smem:[%s1718]] %s184
    %s1720 = scalar_lea.smem [#allocation2], 3
    %1721 = sst [smem:[%s1720]] %s155
    %s1722 = scalar_lea.smem [#allocation2], 4
    %1723 = sst [smem:[%s1722]] %s199
    %s1724 = scalar_lea.smem [#allocation2], 5
    %1725 = sst [smem:[%s1724]] %s1707
    // Predicated region
    $region98: #{tpu_custom_call.1} parent=1 // pred_check
      _
    $region99: #{tpu_custom_call.1} parent=1 // pred_check_branch
      %1727 = sbr.rel (0) target = $region101
    $region100: #{tpu_custom_call.1} parent=1 // pred_region
      %s1729 = ssub.s32 16, 16
      %1730 = vsyncadd [#allocation3], %s1729
      %1733 = dma.smem_to_hbm [#allocation2], 16, %s24, [#allocation3]
    $region101: #{tpu_custom_call.1} parent=1 // pred_fallthru
      _
    // Predicated region
    $region102: #{tpu_custom_call.1} parent=1 // pred_check
      _
    $region103: #{tpu_custom_call.1} parent=1 // pred_check_branch
      %1735 = sbr.rel (0) target = $region105
    $region104: #{tpu_custom_call.1} parent=1 // pred_region
      %1736 = dma.done [#allocation3], 16
    $region105: #{tpu_custom_call.1} parent=1 // pred_fallthru
      _
    %1737 = sfence
    %1738 = vsyncpa [#allocation3], 1

</llo_original>
